<compile_context>
chip_gen: v5e
topology: v5e:2x2
jax: 0.10.0
libtpu: 0.0.40
codegen_flags: <defaults>
</compile_context>

<pallas_src>
import functools

import jax
import jax.numpy as jnp
from jax.experimental import pallas as pl
from jax.experimental.pallas import tpu as pltpu


# ----------------------------------------------------------------------------
# Kernel: fused 3x3 conv (padding=1, no bias) + folded-BN [+ add] + ReLU
# ----------------------------------------------------------------------------
def _conv3x3_bn_relu_kernel(*refs, th, wimg, cin_p, tn, has_add, im2col):
    if has_add:
        (x_ref, top_ref, bot_ref, w_ref, scale_ref, shift_ref, add_ref, o_ref) = refs
    else:
        (x_ref, top_ref, bot_ref, w_ref, scale_ref, shift_ref, o_ref) = refs
        add_ref = None

    r = pl.program_id(1)
    nrow = pl.num_programs(1)
    hw, hw2 = th * wimg, (th + 2) * wimg

    # Row halos: clamped at the image border by the index_map, zero-masked here with
    # jnp.where (not a 0/1 multiply -> NaN/Inf in the clamped row cannot leak in).
    top = top_ref[0]
    bot = bot_ref[0]
    top = jnp.where(r > 0, top, jnp.zeros_like(top))
    bot = jnp.where(r + 1 < nrow, bot, jnp.zeros_like(bot))

    # (th+2, W, Cin) window flattened to (hw2, Cin).  The shifts/masks run in f32
    # (native 32-bit sublane layout); MXU operands are cast back to the weight dtype
    # (bf16) right before the dot.
    rows = jnp.concatenate([top, x_ref[0], bot], axis=0).astype(jnp.float32)
    flat = rows.reshape(hw2, cin_p)

    # +/-1 column shifts on the XLU (pltpu.roll) + border-column masks: no
    # sublane-offset slices / staging-buffer copies, and the roll overlaps the MXU.
    col = jax.lax.broadcasted_iota(
        jnp.int32, (th + 2, wimg, cin_p), 1).reshape(hw2, cin_p)
    zero = jnp.zeros_like(flat)
    left = jnp.where(col > 0, pltpu.roll(flat, 1, 0), zero)                 # value at w-1
    right = jnp.where(col < wimg - 1, pltpu.roll(flat, hw2 - 1, 0), zero)   # value at w+1
    shifted = (left, flat, right)                                           # kw = 0, 1, 2

    def tap(kh, kw):
        # padded rows kh..kh+th-1 (input rows shifted by kh-1); sublane-aligned slice.
        return shifted[kw][kh * wimg:(kh + th) * wimg, :].astype(w_ref.dtype)

    if im2col:
        # One wide-K GEMM (K = 9*Cin_p): fills MXU depth for small Cin and avoids the
        # 8 extra full-tile VPU accumulation passes of the 9-dot form.
        patches = jnp.concatenate(
            [tap(kh, kw) for kh in range(3) for kw in range(3)], axis=-1)
        acc = jnp.dot(patches, w_ref[...], preferred_element_type=jnp.float32)
    else:
        # Used only for very large Cin where the im2col operand would be oversized.
        # TODO(synk): on v7x the MRB could absorb this accumulation in place.
        acc = jnp.zeros((hw, tn), jnp.float32)
        for kh in range(3):
            for kw in range(3):
                k = kh * 3 + kw
                acc = acc + jnp.dot(tap(kh, kw),
                                    w_ref[k * cin_p:(k + 1) * cin_p, :],
                                    preferred_element_type=jnp.float32)

    # Fused folded-BN [+ per-batch time conditioning] + ReLU epilogue in f32.
    y = acc * scale_ref[...] + shift_ref[...]
    if add_ref is not None:
        y = y + add_ref[0]
    y = jnp.maximum(y, 0.0)
    o_ref[0] = y.astype(o_ref.dtype)


# ----------------------------------------------------------------------------
# Wrapper helpers
# ----------------------------------------------------------------------------
def _round_up(v, m):
    return (v + m - 1) // m * m


def _pick_block_rows(H, W, cin_p, tn, in_bytes, out_bytes, budget_bytes):
    """Largest row tile th (divisor of H, sublane-friendly) whose realistic VMEM
    footprint -- double-buffered input/halo/weight/output blocks + in-kernel
    temporaries -- fits budget_bytes."""
    def usage(th):
        x_tile = th * W * cin_p * in_bytes
        halos = 2 * W * cin_p * in_bytes
        w_tile = 9 * cin_p * tn * in_bytes
        o_tile = th * W * tn * out_bytes
        pipelined = 2 * (x_tile + halos + w_tile + o_tile)     # double buffering
        hw2 = (th + 2) * W
        tmp = 3 * hw2 * cin_p * 4                              # flat + 2 rolled copies (f32)
        patches = th * W * 9 * cin_p * in_bytes                # im2col MXU operand
        acc = th * W * tn * 4
        return pipelined + tmp + patches + acc

    best = 1
    for th in range(1, H + 1):
        if H % th == 0 and ((th * W) % 8 == 0 or th == H) and usage(th) <= budget_bytes:
            best = th
    return best


# ----------------------------------------------------------------------------
# Fused conv wrapper
# ----------------------------------------------------------------------------
def conv3x3_bn_relu(x_nhwc, w_hwio, scale, shift, add_nc=None, *,
                    block_rows=None, out_dtype=None, compute_dtype=jnp.bfloat16,
                    vmem_limit_bytes=48 * 1024 * 1024,
                    vmem_budget_bytes=24 * 1024 * 1024):
    """Fused Conv2d(3x3, pad=1, bias=False) + folded BN + (per-batch add) + ReLU.

    x_nhwc : (N, H, W, Cin_p) with Cin_p % 128 == 0; channels >= the weight's Cin
             must be zero (channel-padded).
    w_hwio : (3, 3, Cin, Cout) unpadded HWIO weight.
    scale, shift : (Cout,) folded BatchNorm affine.
    add_nc : optional (N, Cout) per-batch channel bias (time conditioning).
    Returns (N, H, W, Cout_p) with Cout_p = round_up(Cout, 128); the padded output
    channels are exactly zero, so the result can feed the next conv directly.
    """
    N, H, W, cin_p = x_nhwc.shape
    kh, kw, cin, cout = w_hwio.shape
    assert (kh, kw) == (3, 3) and cin <= cin_p and cin_p % 128 == 0
    cout_p = _round_up(cout, 128)
    out_dtype = out_dtype if out_dtype is not None else x_nhwc.dtype

    # Zero-pad weight channels; bf16 for the MXU; epilogue params stay f32.
    w_p = jnp.zeros((3, 3, cin_p, cout_p), compute_dtype)
    w_p = w_p.at[:, :, :cin, :cout].set(w_hwio.astype(compute_dtype))
    w_flat = w_p.reshape(9 * cin_p, cout_p)
    scale_p = jnp.zeros((1, cout_p), jnp.float32).at[0, :cout].set(
        scale.astype(jnp.float32))
    shift_p = jnp.zeros((1, cout_p), jnp.float32).at[0, :cout].set(
        shift.astype(jnp.float32))
    has_add = add_nc is not None
    if has_add:
        add_p = jnp.zeros((N, 1, cout_p), jnp.float32)
        add_p = add_p.at[:, 0, :cout].set(add_nc.astype(jnp.float32))

    # Cout tiling: bounds the resident weight slab / output tile (v7x 64 MiB VMEM)
    # and matches the 256-wide MXU output.
    if cout_p <= 256:
        tn = cout_p
    elif cout_p % 256 == 0:
        tn = 256
    else:
        tn = 128
    n_ct = cout_p // tn

    # Static path choice (no try/except around pallas_call).
    im2col = cin_p <= 256

    in_bytes = jnp.dtype(compute_dtype).itemsize
    out_bytes = jnp.dtype(out_dtype).itemsize
    th = block_rows if block_rows is not None else _pick_block_rows(
        H, W, cin_p, tn, in_bytes, out_bytes, vmem_budget_bytes)
    assert H % th == 0 and ((th * W) % 8 == 0 or th == H)
    R = H // th

    x_c = x_nhwc.astype(compute_dtype)

    in_specs = [
        pl.BlockSpec((1, th, W, cin_p), lambda n, r, c: (n, r, 0, 0)),
        # 1-row halos above/below the tile; the row index is clamped at the image
        # border (kernel zero-masks them there) -> no wrapper-side jnp.pad HBM pass.
        pl.BlockSpec((1, 1, W, cin_p),
                     lambda n, r, c: (n, jnp.maximum(r * th - 1, 0), 0, 0)),
        pl.BlockSpec((1, 1, W, cin_p),
                     lambda n, r, c: (n, jnp.minimum((r + 1) * th, H - 1), 0, 0)),
        # TODO(synk): on v7x, pipeline_mode=pl.Buffered(1) on the weight spec would
        # single-buffer the (per-Cout-tile invariant) weight slab and halve its VMEM.
        pl.BlockSpec((9 * cin_p, tn), lambda n, r, c: (0, c)),
        pl.BlockSpec((1, tn), lambda n, r, c: (0, c)),
        pl.BlockSpec((1, tn), lambda n, r, c: (0, c)),
    ]
    args = [x_c, x_c, x_c, w_flat, scale_p, shift_p]
    if has_add:
        in_specs.append(pl.BlockSpec((1, 1, tn), lambda n, r, c: (n, 0, c)))
        args.append(add_p)

    kernel = functools.partial(_conv3x3_bn_relu_kernel, th=th, wimg=W, cin_p=cin_p,
                               tn=tn, has_add=has_add, im2col=im2col)
    out = pl.pallas_call(
        kernel,
        out_shape=jax.ShapeDtypeStruct((N, H * W, cout_p), out_dtype),
        grid=(N, R, n_ct),
        in_specs=in_specs,
        out_specs=pl.BlockSpec((1, th * W, tn), lambda n, r, c: (n, r, c)),
        compiler_params=pltpu.CompilerParams(
            # No cross-step accumulation: every axis is independent (megacore-friendly).
            dimension_semantics=("parallel", "parallel", "parallel"),
            # 48 MiB is safe on every generation (v7x: 64 MiB physical per core);
            # raise to 64-96 MiB on v5e/v6e together with vmem_budget_bytes.
            vmem_limit_bytes=vmem_limit_bytes,
        ),
    )(*args)
    return out.reshape(N, H, W, cout_p)


# ----------------------------------------------------------------------------
# DoubleConv forward
# ----------------------------------------------------------------------------
def double_conv_forward_nhwc(x_nhwc, params, time_emb=None, *, block_rows=None,
                             eps=1e-5, compute_dtype=jnp.bfloat16):
    """DoubleConv forward, NHWC in / NHWC out (no layout-transpose HBM passes)."""
    N, H, W, Cin = x_nhwc.shape
    Cout = params["w2"].shape[-1]

    # Zero-pad channels to a multiple of 128 once; the intermediate keeps its padded
    # channels at exactly zero, so it feeds the second conv as-is.
    cin_p = _round_up(Cin, 128)
    if cin_p != Cin:
        x_nhwc = jnp.pad(x_nhwc, ((0, 0), (0, 0), (0, 0), (0, cin_p - Cin)))

    # TODO(synk): BatchNorm2d is implemented in inference mode (running stats folded
    # into per-channel scale/shift); training-mode batch statistics are not computed.
    s1 = params["gamma1"] * jax.lax.rsqrt(params["var1"] + eps)
    b1 = params["beta1"] - params["mean1"] * s1
    s2 = params["gamma2"] * jax.lax.rsqrt(params["var2"] + eps)
    b2 = params["beta2"] - params["mean2"] * s2

    # Time conditioning: tiny (N,T)@(T,Cout) GEMM stays in XLA and is folded into the
    # second conv's epilogue instead of a dedicated pallas_call.
    tcond = None
    if params.get("time_emb_dim") is not None and time_emb is not None:
        t = time_emb.astype(jnp.float32)
        tcond = (t * jax.nn.sigmoid(t)) @ params["wt"].astype(jnp.float32) \
            + params["bt"].astype(jnp.float32)

    h = conv3x3_bn_relu(x_nhwc, params["w1"], s1, b1, block_rows=block_rows,
                        out_dtype=compute_dtype, compute_dtype=compute_dtype)
    y = conv3x3_bn_relu(h, params["w2"], s2, b2, add_nc=tcond, block_rows=block_rows,
                        out_dtype=jnp.float32, compute_dtype=compute_dtype)
    return y[..., :Cout]


def double_conv_forward(x_nchw, params, time_emb=None, **kwargs):
    """PyTorch-interface wrapper (NCHW in / NCHW out).  Prefer
    double_conv_forward_nhwc when chaining blocks: it avoids the two full-HBM
    transpose passes done here."""
    x_nhwc = jnp.transpose(x_nchw, (0, 2, 3, 1))
    y = double_conv_forward_nhwc(x_nhwc, params, time_emb, **kwargs)
    return jnp.transpose(y, (0, 3, 1, 2)).astype(x_nchw.dtype)


# ----------------------------------------------------------------------------
# Pure-JAX reference (mirrors the PyTorch module, eval-mode BN) for validation
# ----------------------------------------------------------------------------
def _ref_forward(x, params, time_emb=None, eps=1e-5):
    def conv3(h, w_hwio):
        return jax.lax.conv_general_dilated(
            h, w_hwio, (1, 1), "SAME",
            dimension_numbers=("NCHW", "HWIO", "NCHW"))

    def bn(h, mean, var, gamma, beta):
        inv = jax.lax.rsqrt(var + eps)
        return ((h - mean[None, :, None, None]) * inv[None, :, None, None]
                * gamma[None, :, None, None] + beta[None, :, None, None])

    h = jax.nn.relu(bn(conv3(x, params["w1"]), params["mean1"], params["var1"],
                       params["gamma1"], params["beta1"]))
    h = bn(conv3(h, params["w2"]), params["mean2"], params["var2"],
           params["gamma2"], params["beta2"])
    if params.get("time_emb_dim") is not None and time_emb is not None:
        tc = (time_emb * jax.nn.sigmoid(time_emb)) @ params["wt"] + params["bt"]
        h = h + tc[:, :, None, None]
    return jax.nn.relu(h)


# ----------------------------------------------------------------------------
# Main
# ----------------------------------------------------------------------------
if __name__ == "__main__":
    N, Cin, Cout, H, W, T = 2, 4, 8, 16, 16, 32
    Cmid = Cout                                   # mid_channels defaults to out_channels

    key = jax.random.PRNGKey(0)
    ks = jax.random.split(key, 14)
    params = {
        "time_emb_dim": T,
        "w1": jax.random.normal(ks[0], (3, 3, Cin, Cmid), jnp.float32) * 0.2,
        "mean1": jax.random.normal(ks[1], (Cmid,), jnp.float32) * 0.1,
        "var1": jax.random.uniform(ks[2], (Cmid,), jnp.float32, 0.5, 1.5),
        "gamma1": 1.0 + jax.random.normal(ks[3], (Cmid,), jnp.float32) * 0.1,
        "beta1": jax.random.normal(ks[4], (Cmid,), jnp.float32) * 0.1,
        "w2": jax.random.normal(ks[5], (3, 3, Cmid, Cout), jnp.float32) * 0.2,
        "mean2": jax.random.normal(ks[6], (Cout,), jnp.float32) * 0.1,
        "var2": jax.random.uniform(ks[7], (Cout,), jnp.float32, 0.5, 1.5),
        "gamma2": 1.0 + jax.random.normal(ks[8], (Cout,), jnp.float32) * 0.1,
        "beta2": jax.random.normal(ks[9], (Cout,), jnp.float32) * 0.1,
        "wt": jax.random.normal(ks[10], (T, Cout), jnp.float32) * 0.1,   # Linear(T, Cout)
        "bt": jax.random.normal(ks[11], (Cout,), jnp.float32) * 0.1,
    }

    x = jax.random.normal(ks[12], (N, Cin, H, W), jnp.float32)
    time_emb = jax.random.normal(ks[13], (N, T), jnp.float32)

    ref = _ref_forward(x, params, time_emb)

    # block_rows=8 -> 2 row tiles per image: exercises the halo / roll / masking path.
    out = double_conv_forward(x, params, time_emb, block_rows=8)
    out = jax.block_until_ready(out)
    assert out.shape == (N, Cout, H, W)
    err = float(jnp.max(jnp.abs(out - ref)))
    # bf16 MXU operands -> relaxed tolerance vs. the f32 reference.
    assert jnp.allclose(out, ref, atol=5e-2, rtol=5e-2), f"max_err={err}"

    # Auto-picked row tile (full-image tile here): exercises the VMEM-budget sizing.
    out2 = double_conv_forward(x, params, time_emb)
    out2 = jax.block_until_ready(out2)
    err2 = float(jnp.max(jnp.abs(out2 - ref)))
    assert jnp.allclose(out2, ref, atol=5e-2, rtol=5e-2), f"max_err={err2}"

    print("KERNEL_OK")
</pallas_src>

<mosaic_0001>
module attributes {stable_mosaic.version = 11 : i64} {
  func.func @_conv3x3_bn_relu_kernel(%arg0: i32, %arg1: i32, %arg2: i32, %arg3: memref<1x8x16x128xbf16, #tpu.memory_space<vmem>>, %arg4: memref<1x1x16x128xbf16, #tpu.memory_space<vmem>>, %arg5: memref<1x1x16x128xbf16, #tpu.memory_space<vmem>>, %arg6: memref<1152x128xbf16, #tpu.memory_space<vmem>>, %arg7: memref<1x128xf32, #tpu.memory_space<vmem>>, %arg8: memref<1x128xf32, #tpu.memory_space<vmem>>, %arg9: memref<1x128x128xbf16, #tpu.memory_space<vmem>>) attributes {dimension_semantics = [#tpu.dimension_semantics<parallel>, #tpu.dimension_semantics<parallel>, #tpu.dimension_semantics<parallel>], iteration_bounds = array<i64: 2, 2, 1>, scalar_prefetch = 0 : i64, scratch_operands = 0 : i64, tpu.core_type = #tpu.core_type<tc>, window_params = [{transform_indices = @transform_0, window_bounds = array<i64: 1, 8, 16, 128>}, {transform_indices = @transform_1, window_bounds = array<i64: 1, 1, 16, 128>}, {transform_indices = @transform_2, window_bounds = array<i64: 1, 1, 16, 128>}, {transform_indices = @transform_3, window_bounds = array<i64: 1152, 128>}, {transform_indices = @transform_4, window_bounds = array<i64: 1, 128>}, {transform_indices = @transform_5, window_bounds = array<i64: 1, 128>}, {transform_indices = @transform_6, window_bounds = array<i64: 1, 128, 128>}]} {
    %c0 = arith.constant 0 : index
    %c0_0 = arith.constant 0 : index
    %c0_1 = arith.constant 0 : index
    %c0_2 = arith.constant 0 : index
    %0 = vector.load %arg4[%c0, %c0_0, %c0_1, %c0_2] : memref<1x1x16x128xbf16, #tpu.memory_space<vmem>>, vector<1x1x16x128xbf16>
    %1 = vector.shape_cast %0 : vector<1x1x16x128xbf16> to vector<1x16x128xbf16>
    %c0_3 = arith.constant 0 : index
    %c0_4 = arith.constant 0 : index
    %c0_5 = arith.constant 0 : index
    %c0_6 = arith.constant 0 : index
    %2 = vector.load %arg5[%c0_3, %c0_4, %c0_5, %c0_6] : memref<1x1x16x128xbf16, #tpu.memory_space<vmem>>, vector<1x1x16x128xbf16>
    %3 = vector.shape_cast %2 : vector<1x1x16x128xbf16> to vector<1x16x128xbf16>
    %c0_i32 = arith.constant 0 : i32
    %4 = arith.cmpi sgt, %arg1, %c0_i32 : i32
    %cst = arith.constant 0.000000e+00 : bf16
    %5 = vector.broadcast %cst : bf16 to vector<1x16x128xbf16>
    %6 = arith.select %4, %1, %5 : vector<1x16x128xbf16>
    %c1_i32 = arith.constant 1 : i32
    %7 = arith.addi %arg1, %c1_i32 : i32
    %c2_i32 = arith.constant 2 : i32
    %8 = arith.cmpi slt, %7, %c2_i32 : i32
    %cst_7 = arith.constant 0.000000e+00 : bf16
    %9 = vector.broadcast %cst_7 : bf16 to vector<1x16x128xbf16>
    %10 = arith.select %8, %3, %9 : vector<1x16x128xbf16>
    %c0_8 = arith.constant 0 : index
    %c0_9 = arith.constant 0 : index
    %c0_10 = arith.constant 0 : index
    %c0_11 = arith.constant 0 : index
    %11 = vector.load %arg3[%c0_8, %c0_9, %c0_10, %c0_11] : memref<1x8x16x128xbf16, #tpu.memory_space<vmem>>, vector<1x8x16x128xbf16>
    %12 = vector.shape_cast %11 : vector<1x8x16x128xbf16> to vector<8x16x128xbf16>
    %13 = tpu.concatenate %6, %12, %10 in 0 : vector<1x16x128xbf16>, vector<8x16x128xbf16>, vector<1x16x128xbf16> -> vector<10x16x128xbf16>
    %14 = arith.extf %13 : vector<10x16x128xbf16> to vector<10x16x128xf32>
    %15 = vector.shape_cast %14 : vector<10x16x128xf32> to vector<160x128xf32>
    %16 = tpu.iota {dimensions = array<i32: 1>} : vector<10x16x128xi32>
    %17 = vector.shape_cast %16 : vector<10x16x128xi32> to vector<160x128xi32>
    %cst_12 = arith.constant 0.000000e+00 : f32
    %18 = vector.broadcast %cst_12 : f32 to vector<160x128xf32>
    %c0_i32_13 = arith.constant 0 : i32
    %19 = vector.broadcast %c0_i32_13 : i32 to vector<160x128xi32>
    %20 = arith.cmpi sgt, %17, %19 : vector<160x128xi32>
    %c1_i32_14 = arith.constant 1 : i32
    %21 = tpu.dynamic_rotate %15 by %c1_i32_14 dim 0 : vector<160x128xf32>, i32 -> vector<160x128xf32>
    %22 = arith.select %20, %21, %18 : vector<160x128xi1>, vector<160x128xf32>
    %c15_i32 = arith.constant 15 : i32
    %23 = vector.broadcast %c15_i32 : i32 to vector<160x128xi32>
    %24 = arith.cmpi slt, %17, %23 : vector<160x128xi32>
    %c159_i32 = arith.constant 159 : i32
    %25 = tpu.dynamic_rotate %15 by %c159_i32 dim 0 : vector<160x128xf32>, i32 -> vector<160x128xf32>
    %26 = arith.select %24, %25, %18 : vector<160x128xi1>, vector<160x128xf32>
    %27 = vector.extract_strided_slice %22 {offsets = [0, 0], sizes = [128, 128], strides = [1, 1]} : vector<160x128xf32> to vector<128x128xf32>
    %28 = arith.truncf %27 : vector<128x128xf32> to vector<128x128xbf16>
    %29 = vector.extract_strided_slice %15 {offsets = [0, 0], sizes = [128, 128], strides = [1, 1]} : vector<160x128xf32> to vector<128x128xf32>
    %30 = arith.truncf %29 : vector<128x128xf32> to vector<128x128xbf16>
    %31 = vector.extract_strided_slice %26 {offsets = [0, 0], sizes = [128, 128], strides = [1, 1]} : vector<160x128xf32> to vector<128x128xf32>
    %32 = arith.truncf %31 : vector<128x128xf32> to vector<128x128xbf16>
    %33 = vector.extract_strided_slice %22 {offsets = [16, 0], sizes = [128, 128], strides = [1, 1]} : vector<160x128xf32> to vector<128x128xf32>
    %34 = arith.truncf %33 : vector<128x128xf32> to vector<128x128xbf16>
    %35 = vector.extract_strided_slice %15 {offsets = [16, 0], sizes = [128, 128], strides = [1, 1]} : vector<160x128xf32> to vector<128x128xf32>
    %36 = arith.truncf %35 : vector<128x128xf32> to vector<128x128xbf16>
    %37 = vector.extract_strided_slice %26 {offsets = [16, 0], sizes = [128, 128], strides = [1, 1]} : vector<160x128xf32> to vector<128x128xf32>
    %38 = arith.truncf %37 : vector<128x128xf32> to vector<128x128xbf16>
    %39 = vector.extract_strided_slice %22 {offsets = [32, 0], sizes = [128, 128], strides = [1, 1]} : vector<160x128xf32> to vector<128x128xf32>
    %40 = arith.truncf %39 : vector<128x128xf32> to vector<128x128xbf16>
    %41 = vector.extract_strided_slice %15 {offsets = [32, 0], sizes = [128, 128], strides = [1, 1]} : vector<160x128xf32> to vector<128x128xf32>
    %42 = arith.truncf %41 : vector<128x128xf32> to vector<128x128xbf16>
    %43 = vector.extract_strided_slice %26 {offsets = [32, 0], sizes = [128, 128], strides = [1, 1]} : vector<160x128xf32> to vector<128x128xf32>
    %44 = arith.truncf %43 : vector<128x128xf32> to vector<128x128xbf16>
    %45 = tpu.concatenate %28, %30, %32, %34, %36, %38, %40, %42, %44 in 1 : vector<128x128xbf16>, vector<128x128xbf16>, vector<128x128xbf16>, vector<128x128xbf16>, vector<128x128xbf16>, vector<128x128xbf16>, vector<128x128xbf16>, vector<128x128xbf16>, vector<128x128xbf16> -> vector<128x1152xbf16>
    %c0_15 = arith.constant 0 : index
    %c0_16 = arith.constant 0 : index
    %46 = vector.load %arg6[%c0_15, %c0_16] : memref<1152x128xbf16, #tpu.memory_space<vmem>>, vector<1152x128xbf16>
    %cst_17 = arith.constant dense<0.000000e+00> : vector<128x128xf32>
    %47 = tpu.matmul %45, %46, %cst_17 {dimension_numbers = #tpu.dot_dimension_numbers<[1], [0], [0], [1], [0, 0, 1, 1], [], []>} : vector<128x1152xbf16>, vector<1152x128xbf16>, vector<128x128xf32> -> vector<128x128xf32>
    %c0_18 = arith.constant 0 : index
    %c0_19 = arith.constant 0 : index
    %48 = vector.load %arg7[%c0_18, %c0_19] : memref<1x128xf32, #tpu.memory_space<vmem>>, vector<1x128xf32>
    %49 = vector.broadcast %48 : vector<1x128xf32> to vector<128x128xf32>
    %50 = arith.mulf %47, %49 : vector<128x128xf32>
    %c0_20 = arith.constant 0 : index
    %c0_21 = arith.constant 0 : index
    %51 = vector.load %arg8[%c0_20, %c0_21] : memref<1x128xf32, #tpu.memory_space<vmem>>, vector<1x128xf32>
    %52 = vector.broadcast %51 : vector<1x128xf32> to vector<128x128xf32>
    %53 = arith.addf %50, %52 : vector<128x128xf32>
    %cst_22 = arith.constant 0.000000e+00 : f32
    %54 = vector.broadcast %cst_22 : f32 to vector<128x128xf32>
    %55 = arith.maximumf %53, %54 : vector<128x128xf32>
    %56 = arith.truncf %55 : vector<128x128xf32> to vector<128x128xbf16>
    %c0_23 = arith.constant 0 : index
    %c0_24 = arith.constant 0 : index
    %c0_25 = arith.constant 0 : index
    %57 = vector.load %arg9[%c0_23, %c0_24, %c0_25] : memref<1x128x128xbf16, #tpu.memory_space<vmem>>, vector<1x128x128xbf16>
    %58 = vector.shape_cast %57 : vector<1x128x128xbf16> to vector<128x128xbf16>
    %59 = vector.shape_cast %56 : vector<128x128xbf16> to vector<1x128x128xbf16>
    tpu.vector_store %arg9[%c0_23, %c0_24, %c0_25], %59 {strides = array<i32>} : memref<1x128x128xbf16, #tpu.memory_space<vmem>>, vector<1x128x128xbf16>,
    return
  }
  func.func @transform_0(%arg0: i32, %arg1: i32, %arg2: i32) -> (i32, i32, i32, i32) {
    %c0_i32 = arith.constant 0 : i32
    %c0_i32_0 = arith.constant 0 : i32
    %c0_i32_1 = arith.constant 0 : i32
    return %arg0, %arg1, %c0_i32, %c0_i32_0 : i32, i32, i32, i32
  }
  func.func @transform_1(%arg0: i32, %arg1: i32, %arg2: i32) -> (i32, i32, i32, i32) {
    %c8_i32 = arith.constant 8 : i32
    %0 = arith.muli %arg1, %c8_i32 : i32
    %c1_i32 = arith.constant 1 : i32
    %1 = arith.subi %0, %c1_i32 : i32
    %c0_i32 = arith.constant 0 : i32
    %2 = arith.maxsi %1, %c0_i32 : i32
    %c0_i32_0 = arith.constant 0 : i32
    %c0_i32_1 = arith.constant 0 : i32
    %c0_i32_2 = arith.constant 0 : i32
    return %arg0, %2, %c0_i32_0, %c0_i32_1 : i32, i32, i32, i32
  }
  func.func @transform_2(%arg0: i32, %arg1: i32, %arg2: i32) -> (i32, i32, i32, i32) {
    %c1_i32 = arith.constant 1 : i32
    %0 = arith.addi %arg1, %c1_i32 : i32
    %c8_i32 = arith.constant 8 : i32
    %1 = arith.muli %0, %c8_i32 : i32
    %c15_i32 = arith.constant 15 : i32
    %2 = arith.minsi %1, %c15_i32 : i32
    %c0_i32 = arith.constant 0 : i32
    %c0_i32_0 = arith.constant 0 : i32
    %c0_i32_1 = arith.constant 0 : i32
    return %arg0, %2, %c0_i32, %c0_i32_0 : i32, i32, i32, i32
  }
  func.func @transform_3(%arg0: i32, %arg1: i32, %arg2: i32) -> (i32, i32) {
    %c0_i32 = arith.constant 0 : i32
    %c0_i32_0 = arith.constant 0 : i32
    return %c0_i32, %arg2 : i32, i32
  }
  func.func @transform_4(%arg0: i32, %arg1: i32, %arg2: i32) -> (i32, i32) {
    %c0_i32 = arith.constant 0 : i32
    %c0_i32_0 = arith.constant 0 : i32
    return %c0_i32, %arg2 : i32, i32
  }
  func.func @transform_5(%arg0: i32, %arg1: i32, %arg2: i32) -> (i32, i32) {
    %c0_i32 = arith.constant 0 : i32
    %c0_i32_0 = arith.constant 0 : i32
    return %c0_i32, %arg2 : i32, i32
  }
  func.func @transform_6(%arg0: i32, %arg1: i32, %arg2: i32) -> (i32, i32, i32) {
    %c0_i32 = arith.constant 0 : i32
    return %arg0, %arg1, %arg2 : i32, i32, i32
  }
}

</mosaic_0001>

<llo_original>
// kernel: tpu_custom_call.1
$region0: #{tpu_custom_call.1}
  #allocation0 [shape = 'u32[]', space=smem, size = 0x4, offset = 0x4, fixed_abs, tag = 'smem constant byte address 0x4 - core index']
  #allocation1 [shape = 'u32[72,128]{1,0:T(1,128)}', space=vmem, size = 0x9000, scoped, tag = 'internal scratch']
  %s0 = inlined_call_operand.hbm [shape: bf16[2,16,16,128], index: 0, kind: input, shape index: {}]
  %s1 = inlined_call_operand.hbm [shape: bf16[2,16,16,128], index: 1, kind: input, shape index: {}]
  %s2 = inlined_call_operand.hbm [shape: bf16[2,16,16,128], index: 2, kind: input, shape index: {}]
  %s3 = inlined_call_operand.hbm [shape: bf16[1152,128], index: 3, kind: input, shape index: {}]
  %s4 = inlined_call_operand.vmem [shape: f32[1,128], index: 4, kind: input, shape index: {}]
  %s5 = inlined_call_operand.vmem [shape: f32[1,128], index: 5, kind: input, shape index: {}]
  %s6 = inlined_call_operand.hbm [shape: bf16[2,256,128], index: 6, kind: output, shape index: {}]
  %s7 = sld [smem:[#allocation0]]
  $region73: #{tpu_custom_call.1} parent=0
    _
  %s9 = ssub.s32 1, %s7
  %s10 = scalar_select 0, %s9, %s7
  $region1: #{tpu_custom_call.1} parent=0
    #allocation2 [shape = 'u8[65536]{0}', space=vmem, size = 0x10000, scoped, tag = 'input window, operand 0']
    #allocation3 [shape = 's32[2]{0}', space=sflag, size = 0x8, scoped, tag = 'scoped memory for tpu_custom_call.1']
    #allocation4 [shape = 's32[2]{0}', space=sflag, size = 0x8, scoped, tag = 'scoped memory for tpu_custom_call.1']
    #allocation5 [shape = 'u8[8192]{0}', space=vmem, size = 0x2000, scoped, tag = 'input window, operand 1']
    #allocation6 [shape = 's32[2]{0}', space=sflag, size = 0x8, scoped, tag = 'scoped memory for tpu_custom_call.1']
    #allocation7 [shape = 'u8[8192]{0}', space=vmem, size = 0x2000, scoped, tag = 'input window, operand 2']
    #allocation8 [shape = 'u8[294912]{0}', space=vmem, size = 0x48000, scoped, tag = 'input window, operand 3, single buffered']
    #allocation9 [shape = 's32[1]{0}', space=sflag, size = 0x4, scoped, tag = 'scoped memory for tpu_custom_call.1']
    #allocation10 [shape = 'u8[65536]{0}', space=vmem, size = 0x10000, scoped, tag = 'output window, operand 0']
    %11 = vsyncpa [#allocation3], 0
    %s12 = scalar_lea.sflag [#allocation3], 1
    %13 = vsyncpa %s12, 0
    %14 = vsyncpa [#allocation6], 0
    %s15 = scalar_lea.sflag [#allocation6], 1
    %16 = vsyncpa %s15, 0
    %17 = vsyncpa [#allocation9], 0
    %18 = vsyncpa [#allocation4], 0
    %s19 = scalar_lea.sflag [#allocation4], 1
    %20 = vsyncpa %s19, 0
    loop: start=0, step=1, limit=6
    $region2: #{tpu_custom_call.1} parent=1 // loop_pre_header
      _
    $region3: #{tpu_custom_call.1} parent=1 // loop_header
      %s22 = sphi 0, %s26
      %p23 = scmp.ge.s32.totalorder %s22, 6
      %s29 = sphi 0, %s48
      %s30 = sphi 0, %s44
      %s31 = sphi 0, %s40
      %s32 = sphi 0, %s29
      %s33 = sphi 0, %s30
      %s34 = sphi 0, %s31
      %s35 = sphi 0, %s32
      %s36 = sphi 0, %s33
      %s37 = sphi 0, %s34
      %s53 = sphi 0, %s55
      %s56 = sphi 0, %s53
      %s57 = sphi 0, %s56
      %s73 = sphi 0, %s57
      %s89 = sphi 0, %s91
      %s92 = sphi 0, %s89
      %s93 = sphi 0, %s92
      %s109 = sphi 0, %s93
      %s125 = sphi 0, %s127
      %s128 = sphi 0, %s125
      %s129 = sphi 0, %s128
      %s145 = sphi 0, %s129
      %s151 = sphi 0, %s153
      %s154 = sphi 0, %s151
      %s155 = sphi 0, %s154
      %s171 = sphi 0, %s155
      %s177 = sphi 0, %s179
      %s180 = sphi 0, %s177
      %s181 = sphi 0, %s180
      %s197 = sphi 0, %s181
      %s203 = sphi 0, %s205
      %s206 = sphi 0, %s203
      %s207 = sphi 0, %s206
      %s223 = sphi 0, %s207
      %s233 = sphi 0, %s235
      %s236 = sphi 0, %s233
      %s237 = sphi 0, %s236
      %s253 = sphi 0, %s237
    $region4: #{tpu_custom_call.1} parent=1 // loop_header_branch
      %25 = sbr.rel (%p23) target = $region8
    $region5: #{tpu_custom_call.1} parent=1 // loop_body
      %s27 = ssub.s32 %s22, 1
      %s28 = ssub.s32 %s22, 2
      %s38 = sadd.s32 1, %s31
      %p39 = scmp.ge.s32.totalorder %s38, 1
      %s40 = scalar_select %p39, 0, %s38
      %s41 = sadd.s32 1, %s30
      %s42 = scalar_select %p39, %s41, %s30
      %p43 = scmp.ge.s32.totalorder %s42, 2
      %s44 = scalar_select %p43, 0, %s42
      %s45 = sadd.s32 1, %s29
      %s46 = scalar_select %p43, %s45, %s29
      %p47 = scmp.ge.s32.totalorder %s46, 2
      %s48 = scalar_select %p47, 0, %s46
      %s49 = ssub.s32 %s29, %s48
      %s50 = ssub.s32 %s30, %s44
      %s51 = sor.u32 %s49, %s50
      %p52 = scmp.eq.s32.totalorder %s51, 0
      %s54 = sadd.s32 %s53, 1
      %s55 = scalar_select %p52, %s53, %s54
      %p58 = pneg %p52
      %p59 = scmp.eq.s32.totalorder %s22, 3
      %p60 = por %p58, %p59
      %p61 = scmp.ne.s32.totalorder %s53, %s56
      %p62 = scmp.eq.s32.totalorder %s22, 0
      %p63 = por %p61, %p62
      %p64 = scmp.ne.s32.totalorder %s53, %s56
      %p65 = scmp.eq.s32.totalorder %s27, 3
      %p66 = por %p64, %p65
      %p67 = scmp.ne.s32.totalorder %s56, %s57
      %p68 = scmp.eq.s32.totalorder %s27, 0
      %p69 = por %p67, %p68
      %p70 = scmp.ne.s32.totalorder %s56, %s57
      %p71 = scmp.eq.s32.totalorder %s28, 3
      %p72 = por %p70, %p71
      %p74 = scmp.ne.s32.totalorder %s57, %s73
      %p75 = scmp.eq.s32.totalorder %s28, 0
      %p76 = por %p74, %p75
      %s77 = smul.u32 %s30, 8
      %s78 = ssub.s32 %s77, 1
      %p79 = scmp.gt.s32.totalorder %s78, 0
      %s80 = scalar_select %p79, %s78, 0
      %s81 = smul.u32 %s44, 8
      %s82 = ssub.s32 %s81, 1
      %p83 = scmp.gt.s32.totalorder %s82, 0
      %s84 = scalar_select %p83, %s82, 0
      %s85 = ssub.s32 %s29, %s48
      %s86 = ssub.s32 %s80, %s84
      %s87 = sor.u32 %s85, %s86
      %p88 = scmp.eq.s32.totalorder %s87, 0
      %s90 = sadd.s32 %s89, 1
      %s91 = scalar_select %p88, %s89, %s90
      %p94 = pneg %p88
      %p95 = scmp.eq.s32.totalorder %s22, 3
      %p96 = por %p94, %p95
      %p97 = scmp.ne.s32.totalorder %s89, %s92
      %p98 = scmp.eq.s32.totalorder %s22, 0
      %p99 = por %p97, %p98
      %p100 = scmp.ne.s32.totalorder %s89, %s92
      %p101 = scmp.eq.s32.totalorder %s27, 3
      %p102 = por %p100, %p101
      %p103 = scmp.ne.s32.totalorder %s92, %s93
      %p104 = scmp.eq.s32.totalorder %s27, 0
      %p105 = por %p103, %p104
      %p106 = scmp.ne.s32.totalorder %s92, %s93
      %p107 = scmp.eq.s32.totalorder %s28, 3
      %p108 = por %p106, %p107
      %p110 = scmp.ne.s32.totalorder %s93, %s109
      %p111 = scmp.eq.s32.totalorder %s28, 0
      %p112 = por %p110, %p111
      %s113 = sadd.s32 %s30, 1
      %s114 = smul.u32 %s113, 8
      %p115 = scmp.lt.s32.totalorder %s114, 15
      %s116 = scalar_select %p115, %s114, 15
      %s117 = sadd.s32 %s44, 1
      %s118 = smul.u32 %s117, 8
      %p119 = scmp.lt.s32.totalorder %s118, 15
      %s120 = scalar_select %p119, %s118, 15
      %s121 = ssub.s32 %s29, %s48
      %s122 = ssub.s32 %s116, %s120
      %s123 = sor.u32 %s121, %s122
      %p124 = scmp.eq.s32.totalorder %s123, 0
      %s126 = sadd.s32 %s125, 1
      %s127 = scalar_select %p124, %s125, %s126
      %p130 = pneg %p124
      %p131 = scmp.eq.s32.totalorder %s22, 3
      %p132 = por %p130, %p131
      %p133 = scmp.ne.s32.totalorder %s125, %s128
      %p134 = scmp.eq.s32.totalorder %s22, 0
      %p135 = por %p133, %p134
      %p136 = scmp.ne.s32.totalorder %s125, %s128
      %p137 = scmp.eq.s32.totalorder %s27, 3
      %p138 = por %p136, %p137
      %p139 = scmp.ne.s32.totalorder %s128, %s129
      %p140 = scmp.eq.s32.totalorder %s27, 0
      %p141 = por %p139, %p140
      %p142 = scmp.ne.s32.totalorder %s128, %s129
      %p143 = scmp.eq.s32.totalorder %s28, 3
      %p144 = por %p142, %p143
      %p146 = scmp.ne.s32.totalorder %s129, %s145
      %p147 = scmp.eq.s32.totalorder %s28, 0
      %p148 = por %p146, %p147
      %s149 = ssub.s32 %s31, %s40
      %p150 = scmp.eq.s32.totalorder %s149, 0
      %s152 = sadd.s32 %s151, 1
      %s153 = scalar_select %p150, %s151, %s152
      %p156 = pneg %p150
      %p157 = scmp.eq.s32.totalorder %s22, 3
      %p158 = por %p156, %p157
      %p159 = scmp.ne.s32.totalorder %s151, %s154
      %p160 = scmp.eq.s32.totalorder %s22, 0
      %p161 = por %p159, %p160
      %p162 = scmp.ne.s32.totalorder %s151, %s154
      %p163 = scmp.eq.s32.totalorder %s27, 3
      %p164 = por %p162, %p163
      %p165 = scmp.ne.s32.totalorder %s154, %s155
      %p166 = scmp.eq.s32.totalorder %s27, 0
      %p167 = por %p165, %p166
      %p168 = scmp.ne.s32.totalorder %s154, %s155
      %p169 = scmp.eq.s32.totalorder %s28, 3
      %p170 = por %p168, %p169
      %p172 = scmp.ne.s32.totalorder %s155, %s171
      %p173 = scmp.eq.s32.totalorder %s28, 0
      %p174 = por %p172, %p173
      %s175 = ssub.s32 %s31, %s40
      %p176 = scmp.eq.s32.totalorder %s175, 0
      %s178 = sadd.s32 %s177, 1
      %s179 = scalar_select %p176, %s177, %s178
      %p182 = pneg %p176
      %p183 = scmp.eq.s32.totalorder %s22, 3
      %p184 = por %p182, %p183
      %p185 = scmp.ne.s32.totalorder %s177, %s180
      %p186 = scmp.eq.s32.totalorder %s22, 0
      %p187 = por %p185, %p186
      %p188 = scmp.ne.s32.totalorder %s177, %s180
      %p189 = scmp.eq.s32.totalorder %s27, 3
      %p190 = por %p188, %p189
      %p191 = scmp.ne.s32.totalorder %s180, %s181
      %p192 = scmp.eq.s32.totalorder %s27, 0
      %p193 = por %p191, %p192
      %p194 = scmp.ne.s32.totalorder %s180, %s181
      %p195 = scmp.eq.s32.totalorder %s28, 3
      %p196 = por %p194, %p195
      %p198 = scmp.ne.s32.totalorder %s181, %s197
      %p199 = scmp.eq.s32.totalorder %s28, 0
      %p200 = por %p198, %p199
      %s201 = ssub.s32 %s31, %s40
      %p202 = scmp.eq.s32.totalorder %s201, 0
      %s204 = sadd.s32 %s203, 1
      %s205 = scalar_select %p202, %s203, %s204
      %p208 = pneg %p202
      %p209 = scmp.eq.s32.totalorder %s22, 3
      %p210 = por %p208, %p209
      %p211 = scmp.ne.s32.totalorder %s203, %s206
      %p212 = scmp.eq.s32.totalorder %s22, 0
      %p213 = por %p211, %p212
      %p214 = scmp.ne.s32.totalorder %s203, %s206
      %p215 = scmp.eq.s32.totalorder %s27, 3
      %p216 = por %p214, %p215
      %p217 = scmp.ne.s32.totalorder %s206, %s207
      %p218 = scmp.eq.s32.totalorder %s27, 0
      %p219 = por %p217, %p218
      %p220 = scmp.ne.s32.totalorder %s206, %s207
      %p221 = scmp.eq.s32.totalorder %s28, 3
      %p222 = por %p220, %p221
      %p224 = scmp.ne.s32.totalorder %s207, %s223
      %p225 = scmp.eq.s32.totalorder %s28, 0
      %p226 = por %p224, %p225
      %s227 = ssub.s32 %s29, %s48
      %s228 = ssub.s32 %s30, %s44
      %s229 = sor.u32 %s227, %s228
      %s230 = ssub.s32 %s31, %s40
      %s231 = sor.u32 %s229, %s230
      %p232 = scmp.eq.s32.totalorder %s231, 0
      %s234 = sadd.s32 %s233, 1
      %s235 = scalar_select %p232, %s233, %s234
      %p238 = pneg %p232
      %p239 = scmp.eq.s32.totalorder %s22, 3
      %p240 = por %p238, %p239
      %p241 = scmp.ne.s32.totalorder %s233, %s236
      %p242 = scmp.eq.s32.totalorder %s22, 0
      %p243 = por %p241, %p242
      %p244 = scmp.ne.s32.totalorder %s233, %s236
      %p245 = scmp.eq.s32.totalorder %s27, 3
      %p246 = por %p244, %p245
      %p247 = scmp.ne.s32.totalorder %s236, %s237
      %p248 = scmp.eq.s32.totalorder %s27, 0
      %p249 = por %p247, %p248
      %p250 = scmp.ne.s32.totalorder %s236, %s237
      %p251 = scmp.eq.s32.totalorder %s28, 3
      %p252 = por %p250, %p251
      %p254 = scmp.ne.s32.totalorder %s237, %s253
      %p255 = scmp.eq.s32.totalorder %s28, 0
      %p256 = por %p254, %p255
      %p257 = scmp.le.s32.totalorder 1, %s22
      %p258 = scmp.lt.s32.totalorder %s22, 5
      %p259 = pnand %p257, %p258
      %p260 = pneg %p259
      // Predicated region
      $region9: #{tpu_custom_call.1} parent=5 // pred_check
        _
      $region10: #{tpu_custom_call.1} parent=5 // pred_check_branch
        %262 = sbr.rel (%p259) target = $region12
      $region11: #{tpu_custom_call.1} parent=5 // pred_region
        %s263 = ssub.s32 %s22, 1
        // Predicated region
        $region13: #{tpu_custom_call.1} parent=11 // pred_check
          %p264 = pneg %p167
        $region14: #{tpu_custom_call.1} parent=11 // pred_check_branch
          %266 = sbr.rel (%p264) target = $region16
        $region15: #{tpu_custom_call.1} parent=11 // pred_region
          %268 = vsyncadd [#allocation9], 0
          %s269 = smul.addr %s34, 4
          %s270 = scalar_lea.hbm %s3, %s269
          %s271 = sshll.u32 %s270, 4
          %s272 = int_to_ptr.hbm [resolvable:$true] %s271
          %s273 = sshll.u32 [#allocation8], 4
          %s274 = int_to_ptr.vmem [resolvable:$true] %s273
          %279 = dma.hbm_to_vmem [thread:$0]  %s272, 9216, %s274, [#allocation9], 64, 64, 4
        $region16: #{tpu_custom_call.1} parent=11 // pred_fallthru
          _
        // Predicated region
        $region17: #{tpu_custom_call.1} parent=11 // pred_check
          %p280 = pneg %p193
        $region18: #{tpu_custom_call.1} parent=11 // pred_check_branch
          %282 = sbr.rel (%p280) target = $region20
        $region19: #{tpu_custom_call.1} parent=11 // pred_region
          %p283 = scmp.lt.s32.totalorder %s34, 0
          %s284 = scalar_select %p283, %s34, 0
          %s285 = scalar_lea.vmem %s4, %s284
        $region20: #{tpu_custom_call.1} parent=11 // pred_fallthru
          _
        // Predicated region
        $region21: #{tpu_custom_call.1} parent=11 // pred_check
          %p286 = pneg %p219
        $region22: #{tpu_custom_call.1} parent=11 // pred_check_branch
          %288 = sbr.rel (%p286) target = $region24
        $region23: #{tpu_custom_call.1} parent=11 // pred_region
          %p289 = scmp.lt.s32.totalorder %s34, 0
          %s290 = scalar_select %p289, %s34, 0
          %s291 = scalar_lea.vmem %s5, %s290
        $region24: #{tpu_custom_call.1} parent=11 // pred_fallthru
          _
      $region12: #{tpu_custom_call.1} parent=5 // pred_fallthru
        _
      %p292 = scmp.lt.s32.totalorder %s22, 4
      // Predicated region
      $region25: #{tpu_custom_call.1} parent=5 // pred_check
        %p293 = pneg %p292
      $region26: #{tpu_custom_call.1} parent=5 // pred_check_branch
        %295 = sbr.rel (%p293) target = $region28
      $region27: #{tpu_custom_call.1} parent=5 // pred_region
        // Predicated region
        $region29: #{tpu_custom_call.1} parent=27 // pred_check
          %p296 = pneg %p63
        $region30: #{tpu_custom_call.1} parent=27 // pred_check_branch
          %298 = sbr.rel (%p296) target = $region32
        $region31: #{tpu_custom_call.1} parent=27 // pred_region
          %s299 = sand.u32 %s53, 1
          %s300 = scalar_lea.sflag [#allocation3], %s299
          %s301 = sand.u32 %s53, 1
          %s302 = smul.addr %s301, 64
          %s303 = scalar_lea.vmem [#allocation2], %s302
          %s304 = smul.u32 8, %s30
          %306 = vsyncadd %s300, 0
          %s307 = smul.addr %s304, 2
          %s308 = smul.addr %s29, 32
          %s309 = sadd.s32 %s307, %s308
          %s310 = smul.addr %s309, 4
          %s311 = scalar_lea.hbm %s0, %s310
          %s312 = sshll.u32 %s311, 4
          %s313 = int_to_ptr.hbm [resolvable:$true] %s312
          %s314 = sshll.u32 %s303, 4
          %s315 = int_to_ptr.vmem [resolvable:$true] %s314
          %320 = dma.hbm_to_vmem [thread:$0]  %s313, 1024, %s315, %s300, 64, 64, 4
        $region32: #{tpu_custom_call.1} parent=27 // pred_fallthru
          _
        // Predicated region
        $region33: #{tpu_custom_call.1} parent=27 // pred_check
          %p321 = pneg %p99
        $region34: #{tpu_custom_call.1} parent=27 // pred_check_branch
          %323 = sbr.rel (%p321) target = $region36
        $region35: #{tpu_custom_call.1} parent=27 // pred_region
          %s324 = sand.u32 %s22, 1
          %s325 = scalar_lea.sflag [#allocation6], %s324
          %s326 = sand.u32 %s89, 1
          %s327 = smul.addr %s326, 8
          %s328 = scalar_lea.vmem [#allocation5], %s327
          %s329 = smul.u32 %s30, 8
          %s330 = ssub.s32 %s329, 1
          %p331 = scmp.gt.s32.totalorder %s330, 0
          %s332 = scalar_select %p331, %s330, 0
          %334 = vsyncadd %s325, 0
          %s335 = smul.addr %s332, 2
          %s336 = smul.addr %s29, 32
          %s337 = sadd.s32 %s335, %s336
          %s338 = smul.addr %s337, 4
          %s339 = scalar_lea.hbm %s1, %s338
          %s340 = sshll.u32 %s339, 4
          %s341 = int_to_ptr.hbm [resolvable:$true] %s340
          %s342 = sshll.u32 %s328, 4
          %s343 = int_to_ptr.vmem [resolvable:$true] %s342
          %348 = dma.hbm_to_vmem [thread:$0]  %s341, 128, %s343, %s325, 64, 64, 4
        $region36: #{tpu_custom_call.1} parent=27 // pred_fallthru
          _
        // Predicated region
        $region37: #{tpu_custom_call.1} parent=27 // pred_check
          %p349 = pneg %p135
        $region38: #{tpu_custom_call.1} parent=27 // pred_check_branch
          %351 = sbr.rel (%p349) target = $region40
        $region39: #{tpu_custom_call.1} parent=27 // pred_region
          %s352 = sand.u32 %s22, 1
          %s353 = scalar_lea.sflag [#allocation6], %s352
          %s354 = sand.u32 %s125, 1
          %s355 = smul.addr %s354, 8
          %s356 = scalar_lea.vmem [#allocation7], %s355
          %s357 = sadd.s32 %s30, 1
          %s358 = smul.u32 %s357, 8
          %p359 = scmp.lt.s32.totalorder %s358, 15
          %s360 = scalar_select %p359, %s358, 15
          %362 = vsyncadd %s353, 0
          %s363 = smul.addr %s360, 2
          %s364 = smul.addr %s29, 32
          %s365 = sadd.s32 %s363, %s364
          %s366 = smul.addr %s365, 4
          %s367 = scalar_lea.hbm %s2, %s366
          %s368 = sshll.u32 %s367, 4
          %s369 = int_to_ptr.hbm [resolvable:$true] %s368
          %s370 = sshll.u32 %s356, 4
          %s371 = int_to_ptr.vmem [resolvable:$true] %s370
          %376 = dma.hbm_to_vmem [thread:$0]  %s369, 128, %s371, %s353, 64, 64, 4
        $region40: #{tpu_custom_call.1} parent=27 // pred_fallthru
          _
      $region28: #{tpu_custom_call.1} parent=5 // pred_fallthru
        _
      %p377 = scmp.le.s32.totalorder 1, %s22
      %p378 = scmp.lt.s32.totalorder %s22, 5
      %p379 = pnand %p377, %p378
      %p380 = pneg %p379
      // Predicated region
      $region41: #{tpu_custom_call.1} parent=5 // pred_check
        _
      $region42: #{tpu_custom_call.1} parent=5 // pred_check_branch
        %382 = sbr.rel (%p379) target = $region44
      $region43: #{tpu_custom_call.1} parent=5 // pred_region
        %s383 = ssub.s32 %s22, 1
        %s384 = sand.u32 %s56, 1
        %s385 = scalar_lea.sflag [#allocation3], %s384
        %s386 = sand.u32 %s56, 1
        %s387 = smul.addr %s386, 64
        %s388 = scalar_lea.vmem [#allocation2], %s387
        // Predicated region
        $region45: #{tpu_custom_call.1} parent=43 // pred_check
          %p389 = pneg %p69
        $region46: #{tpu_custom_call.1} parent=43 // pred_check_branch
          %391 = sbr.rel (%p389) target = $region48
        $region47: #{tpu_custom_call.1} parent=43 // pred_region
          %393 = dma.done %s385, 1024
        $region48: #{tpu_custom_call.1} parent=43 // pred_fallthru
          _
        %s394 = sand.u32 %s27, 1
        %s395 = scalar_lea.sflag [#allocation6], %s394
        %s396 = sand.u32 %s92, 1
        %s397 = smul.addr %s396, 8
        %s398 = scalar_lea.vmem [#allocation5], %s397
        // Predicated region
        $region49: #{tpu_custom_call.1} parent=43 // pred_check
          %p399 = pneg %p105
        $region50: #{tpu_custom_call.1} parent=43 // pred_check_branch
          %401 = sbr.rel (%p399) target = $region52
        $region51: #{tpu_custom_call.1} parent=43 // pred_region
          %403 = dma.done %s395, 128
        $region52: #{tpu_custom_call.1} parent=43 // pred_fallthru
          _
        %s404 = sand.u32 %s27, 1
        %s405 = scalar_lea.sflag [#allocation6], %s404
        %s406 = sand.u32 %s128, 1
        %s407 = smul.addr %s406, 8
        %s408 = scalar_lea.vmem [#allocation7], %s407
        // Predicated region
        $region53: #{tpu_custom_call.1} parent=43 // pred_check
          %p409 = pneg %p141
        $region54: #{tpu_custom_call.1} parent=43 // pred_check_branch
          %411 = sbr.rel (%p409) target = $region56
        $region55: #{tpu_custom_call.1} parent=43 // pred_region
          %413 = dma.done %s405, 128
        $region56: #{tpu_custom_call.1} parent=43 // pred_fallthru
          _
        // Predicated region
        $region57: #{tpu_custom_call.1} parent=43 // pred_check
          %p414 = pneg %p167
        $region58: #{tpu_custom_call.1} parent=43 // pred_check_branch
          %416 = sbr.rel (%p414) target = $region60
        $region59: #{tpu_custom_call.1} parent=43 // pred_region
          %418 = dma.done [#allocation9], 9216
        $region60: #{tpu_custom_call.1} parent=43 // pred_fallthru
          _
        %s419 = sand.u32 %s56, 1
        %s420 = scalar_lea.sflag [#allocation3], %s419
        %s421 = sand.u32 %s56, 1
        %s422 = smul.addr %s421, 64
        %s423 = scalar_lea.vmem [#allocation2], %s422
        %p424 = pneg %p69
        %p425 = pneg %p66
        %s426 = sand.u32 %s27, 1
        %s427 = scalar_lea.sflag [#allocation6], %s426
        %s428 = sand.u32 %s92, 1
        %s429 = smul.addr %s428, 8
        %s430 = scalar_lea.vmem [#allocation5], %s429
        %p431 = pneg %p105
        %p432 = pneg %p102
        %s433 = sand.u32 %s27, 1
        %s434 = scalar_lea.sflag [#allocation6], %s433
        %s435 = sand.u32 %s128, 1
        %s436 = smul.addr %s435, 8
        %s437 = scalar_lea.vmem [#allocation7], %s436
        %p438 = pneg %p141
        %p439 = pneg %p138
        %p440 = pneg %p167
        %p441 = pneg %p164
        %p442 = scmp.lt.s32.totalorder %s34, 0
        %s443 = scalar_select %p442, %s34, 0
        %s444 = scalar_lea.vmem %s4, %s443
        %p445 = pneg %p193
        %p446 = pneg %p190
        %p447 = scmp.lt.s32.totalorder %s34, 0
        %s448 = scalar_select %p447, %s34, 0
        %s449 = scalar_lea.vmem %s5, %s448
        %p450 = pneg %p219
        %p451 = pneg %p216
        %p452 = pneg %p249
        %p453 = pneg %p246
        %s454 = sand.u32 %s236, 1
        %s455 = scalar_lea.sflag [#allocation4], %s454
        %s456 = sand.u32 %s236, 1
        %s457 = smul.addr %s456, 64
        %s458 = scalar_lea.vmem [#allocation10], %s457
        %s459 = smul.u32 8, %s33
        %s460 = smul.u32 %s33, 8
        %s461 = ssub.s32 %s460, 1
        %p462 = scmp.gt.s32.totalorder %s461, 0
        %s463 = scalar_select %p462, %s461, 0
        %s464 = sadd.s32 %s33, 1
        %s465 = smul.u32 %s464, 8
        %p466 = scmp.lt.s32.totalorder %s465, 15
        %s467 = scalar_select %p466, %s465, 15
        %p468 = scmp.lt.s32.totalorder %s34, 0
        %s469 = scalar_select %p468, %s34, 0
        %s470 = scalar_lea.vmem %s4, %s469
        %p471 = scmp.lt.s32.totalorder %s34, 0
        %s472 = scalar_select %p471, %s34, 0
        %s473 = scalar_lea.vmem %s5, %s472
        %s474 = smul.u32 16, %s33
        %v476 = vld [vmem:[%s398] sm:$0xf]
        %v477 = vld [vmem:[%s398 + $0x4] sm:$0xf]
        %v478 = vld [vmem:[%s408] sm:$0xf]
        %v479 = vld [vmem:[%s408 + $0x4] sm:$0xf]
        %p480 = scmp.gt.s32.totalorder %s33, 0
        %s481 = scalar_select %p480, 1, 0
        %v482 = vstv %s481
        %vm483 = vcmp.eq.s32.totalorder %v482, 1
        %v484 = vsel %vm483, %v476, 0
        %v485 = vsel %vm483, %v477, 0
        %s486 = sadd.s32 %s33, 1
        %p487 = scmp.lt.s32.totalorder %s486, 2
        %s488 = scalar_select %p487, 1, 0
        %v489 = vstv %s488
        %vm490 = vcmp.eq.s32.totalorder %v489, 1
        %v491 = vsel %vm490, %v478, 0
        %v492 = vsel %vm490, %v479, 0
        %v493 = vld [vmem:[%s388] sm:$0xf]
        %v494 = vld [vmem:[%s388 + $0x4] sm:$0xf]
        %v495 = vld [vmem:[%s388 + $0x8] sm:$0xf]
        %v496 = vld [vmem:[%s388 + $0xc] sm:$0xf]
        %v497 = vld [vmem:[%s388 + $0x10] sm:$0xf]
        %v498 = vld [vmem:[%s388 + $0x14] sm:$0xf]
        %v499 = vld [vmem:[%s388 + $0x18] sm:$0xf]
        %v500 = vld [vmem:[%s388 + $0x1c] sm:$0xf]
        %v501 = vld [vmem:[%s388 + $0x20] sm:$0xf]
        %v502 = vld [vmem:[%s388 + $0x24] sm:$0xf]
        %v503 = vld [vmem:[%s388 + $0x28] sm:$0xf]
        %v504 = vld [vmem:[%s388 + $0x2c] sm:$0xf]
        %v505 = vld [vmem:[%s388 + $0x30] sm:$0xf]
        %v506 = vld [vmem:[%s388 + $0x34] sm:$0xf]
        %v507 = vld [vmem:[%s388 + $0x38] sm:$0xf]
        %v508 = vld [vmem:[%s388 + $0x3c] sm:$0xf]
        %v509 = vunpack.c.l.bf16 %v484
        %v510 = vunpack.c.l.bf16 %v485
        %v511 = vunpack.c.l.bf16 %v493
        %v512 = vunpack.c.l.bf16 %v494
        %v513 = vunpack.c.l.bf16 %v495
        %v514 = vunpack.c.l.bf16 %v496
        %v515 = vunpack.c.l.bf16 %v497
        %v516 = vunpack.c.l.bf16 %v498
        %v517 = vunpack.c.l.bf16 %v499
        %v518 = vunpack.c.l.bf16 %v500
        %v519 = vunpack.c.l.bf16 %v501
        %v520 = vunpack.c.l.bf16 %v502
        %v521 = vunpack.c.l.bf16 %v503
        %v522 = vunpack.c.l.bf16 %v504
        %v523 = vunpack.c.l.bf16 %v505
        %v524 = vunpack.c.l.bf16 %v506
        %v525 = vunpack.c.l.bf16 %v507
        %v526 = vunpack.c.l.bf16 %v508
        %v527 = vunpack.c.l.bf16 %v491
        %v528 = vunpack.c.l.bf16 %v492
        %v529 = vlaneseq
        %v530 = vshrl.u32 %v529, 7
        %v531 = vadd.s32 %v530, 8
        %vm532 = vcmp.gt.s32.totalorder %v530, 0
        %vm533 = vcmp.gt.s32.totalorder %v531, 0
        %v534 = vrot.slane %v509, 7
        %v535 = vrot.slane %v510, 7
        %v536 = vrot.slane %v511, 7
        %v537 = vrot.slane %v512, 7
        %v538 = vrot.slane %v513, 7
        %v539 = vrot.slane %v514, 7
        %v540 = vrot.slane %v515, 7
        %v541 = vrot.slane %v516, 7
        %v542 = vrot.slane %v517, 7
        %v543 = vrot.slane %v518, 7
        %v544 = vrot.slane %v519, 7
        %v545 = vrot.slane %v520, 7
        %v546 = vrot.slane %v521, 7
        %v547 = vrot.slane %v522, 7
        %v548 = vrot.slane %v523, 7
        %v549 = vrot.slane %v524, 7
        %v550 = vrot.slane %v525, 7
        %v551 = vrot.slane %v526, 7
        %v552 = vrot.slane %v527, 7
        %v553 = vrot.slane %v528, 7
        %vm554 = vcmp.lt.s32.totalorder %v530, 1
        %v555 = vsel %vm554, %v552, %v553
        %v556 = vsel %vm554, %v551, %v552
        %v557 = vsel %vm554, %v550, %v551
        %v558 = vsel %vm554, %v549, %v550
        %v559 = vsel %vm554, %v548, %v549
        %v560 = vsel %vm554, %v547, %v548
        %v561 = vsel %vm554, %v546, %v547
        %v562 = vsel %vm554, %v545, %v546
        %v563 = vsel %vm554, %v544, %v545
        %v564 = vsel %vm554, %v543, %v544
        %v565 = vsel %vm554, %v542, %v543
        %v566 = vsel %vm554, %v541, %v542
        %v567 = vsel %vm554, %v540, %v541
        %v568 = vsel %vm554, %v539, %v540
        %v569 = vsel %vm554, %v538, %v539
        %v570 = vsel %vm554, %v537, %v538
        %v571 = vsel %vm554, %v536, %v537
        %v572 = vsel %vm554, %v535, %v536
        %v573 = vsel %vm554, %v534, %v535
        %v574 = vsel %vm554, %v553, %v534
        %v575 = vsel %vm532, %v574, 0.0
        %v576 = vsel %vm533, %v573, 0.0
        %v577 = vsel %vm532, %v572, 0.0
        %v578 = vsel %vm533, %v571, 0.0
        %v579 = vsel %vm532, %v570, 0.0
        %v580 = vsel %vm533, %v569, 0.0
        %v581 = vsel %vm532, %v568, 0.0
        %v582 = vsel %vm533, %v567, 0.0
        %v583 = vsel %vm532, %v566, 0.0
        %v584 = vsel %vm533, %v565, 0.0
        %v585 = vsel %vm532, %v564, 0.0
        %v586 = vsel %vm533, %v563, 0.0
        %v587 = vsel %vm532, %v562, 0.0
        %v588 = vsel %vm533, %v561, 0.0
        %v589 = vsel %vm532, %v560, 0.0
        %v590 = vsel %vm533, %v559, 0.0
        %v591 = vsel %vm532, %v558, 0.0
        %v592 = vsel %vm533, %v557, 0.0
        %v593 = vsel %vm532, %v556, 0.0
        %v594 = vsel %vm533, %v555, 0.0
        %vm595 = vcmp.lt.s32.totalorder %v530, 15
        %vm596 = vcmp.lt.s32.totalorder %v531, 15
        %v597 = vrot.slane %v509, 1
        %v598 = vrot.slane %v510, 1
        %v599 = vrot.slane %v511, 1
        %v600 = vrot.slane %v512, 1
        %v601 = vrot.slane %v513, 1
        %v602 = vrot.slane %v514, 1
        %v603 = vrot.slane %v515, 1
        %v604 = vrot.slane %v516, 1
        %v605 = vrot.slane %v517, 1
        %v606 = vrot.slane %v518, 1
        %v607 = vrot.slane %v519, 1
        %v608 = vrot.slane %v520, 1
        %v609 = vrot.slane %v521, 1
        %v610 = vrot.slane %v522, 1
        %v611 = vrot.slane %v523, 1
        %v612 = vrot.slane %v524, 1
        %v613 = vrot.slane %v525, 1
        %v614 = vrot.slane %v526, 1
        %v615 = vrot.slane %v527, 1
        %v616 = vrot.slane %v528, 1
        %vm617 = vcmp.lt.s32.totalorder %v530, 7
        %v618 = vsel %vm617, %v615, %v616
        %v619 = vsel %vm617, %v614, %v615
        %v620 = vsel %vm617, %v613, %v614
        %v621 = vsel %vm617, %v612, %v613
        %v622 = vsel %vm617, %v611, %v612
        %v623 = vsel %vm617, %v610, %v611
        %v624 = vsel %vm617, %v609, %v610
        %v625 = vsel %vm617, %v608, %v609
        %v626 = vsel %vm617, %v607, %v608
        %v627 = vsel %vm617, %v606, %v607
        %v628 = vsel %vm617, %v605, %v606
        %v629 = vsel %vm617, %v604, %v605
        %v630 = vsel %vm617, %v603, %v604
        %v631 = vsel %vm617, %v602, %v603
        %v632 = vsel %vm617, %v601, %v602
        %v633 = vsel %vm617, %v600, %v601
        %v634 = vsel %vm617, %v599, %v600
        %v635 = vsel %vm617, %v598, %v599
        %v636 = vsel %vm617, %v597, %v598
        %v637 = vsel %vm617, %v616, %v597
        %v638 = vsel %vm595, %v636, 0.0
        %v639 = vsel %vm596, %v635, 0.0
        %v640 = vsel %vm595, %v634, 0.0
        %v641 = vsel %vm596, %v633, 0.0
        %v642 = vsel %vm595, %v632, 0.0
        %v643 = vsel %vm596, %v631, 0.0
        %v644 = vsel %vm595, %v630, 0.0
        %v645 = vsel %vm596, %v629, 0.0
        %v646 = vsel %vm595, %v628, 0.0
        %v647 = vsel %vm596, %v627, 0.0
        %v648 = vsel %vm595, %v626, 0.0
        %v649 = vsel %vm596, %v625, 0.0
        %v650 = vsel %vm595, %v624, 0.0
        %v651 = vsel %vm596, %v623, 0.0
        %v652 = vsel %vm595, %v622, 0.0
        %v653 = vsel %vm596, %v621, 0.0
        %v654 = vsel %vm595, %v620, 0.0
        %v655 = vsel %vm596, %v619, 0.0
        %v656 = vsel %vm595, %v618, 0.0
        %v657 = vsel %vm596, %v637, 0.0
        %v658 = vpack.c.bf16 %v575, %v575
        %v659 = vpack.c.bf16 %v576, %v576
        %v660 = vpack.c.bf16 %v577, %v577
        %v661 = vpack.c.bf16 %v578, %v578
        %v662 = vpack.c.bf16 %v579, %v579
        %v663 = vpack.c.bf16 %v580, %v580
        %v664 = vpack.c.bf16 %v581, %v581
        %v665 = vpack.c.bf16 %v582, %v582
        %v666 = vpack.c.bf16 %v583, %v583
        %v667 = vpack.c.bf16 %v584, %v584
        %v668 = vpack.c.bf16 %v585, %v585
        %v669 = vpack.c.bf16 %v586, %v586
        %v670 = vpack.c.bf16 %v587, %v587
        %v671 = vpack.c.bf16 %v588, %v588
        %v672 = vpack.c.bf16 %v589, %v589
        %v673 = vpack.c.bf16 %v590, %v590
        %v674 = vpack.c.bf16 %v509, %v509
        %v675 = vpack.c.bf16 %v510, %v510
        %v676 = vpack.c.bf16 %v511, %v511
        %v677 = vpack.c.bf16 %v512, %v512
        %v678 = vpack.c.bf16 %v513, %v513
        %v679 = vpack.c.bf16 %v514, %v514
        %v680 = vpack.c.bf16 %v515, %v515
        %v681 = vpack.c.bf16 %v516, %v516
        %v682 = vpack.c.bf16 %v517, %v517
        %v683 = vpack.c.bf16 %v518, %v518
        %v684 = vpack.c.bf16 %v519, %v519
        %v685 = vpack.c.bf16 %v520, %v520
        %v686 = vpack.c.bf16 %v521, %v521
        %v687 = vpack.c.bf16 %v522, %v522
        %v688 = vpack.c.bf16 %v523, %v523
        %v689 = vpack.c.bf16 %v524, %v524
        %v690 = vpack.c.bf16 %v638, %v638
        %v691 = vpack.c.bf16 %v639, %v639
        %v692 = vpack.c.bf16 %v640, %v640
        %v693 = vpack.c.bf16 %v641, %v641
        %v694 = vpack.c.bf16 %v642, %v642
        %v695 = vpack.c.bf16 %v643, %v643
        %v696 = vpack.c.bf16 %v644, %v644
        %v697 = vpack.c.bf16 %v645, %v645
        %v698 = vpack.c.bf16 %v646, %v646
        %v699 = vpack.c.bf16 %v647, %v647
        %v700 = vpack.c.bf16 %v648, %v648
        %v701 = vpack.c.bf16 %v649, %v649
        %v702 = vpack.c.bf16 %v650, %v650
        %v703 = vpack.c.bf16 %v651, %v651
        %v704 = vpack.c.bf16 %v652, %v652
        %v705 = vpack.c.bf16 %v653, %v653
        %v706 = vpack.c.bf16 %v591, %v591
        %v707 = vpack.c.bf16 %v592, %v592
        %v708 = vpack.c.bf16 %v525, %v525
        %v709 = vpack.c.bf16 %v526, %v526
        %v710 = vpack.c.bf16 %v654, %v654
        %v711 = vpack.c.bf16 %v655, %v655
        %v712 = vpack.c.bf16 %v593, %v593
        %v713 = vpack.c.bf16 %v594, %v594
        %v714 = vpack.c.bf16 %v527, %v527
        %v715 = vpack.c.bf16 %v528, %v528
        %v716 = vpack.c.bf16 %v656, %v656
        %v717 = vpack.c.bf16 %v657, %v657
        %v734 = vunpack.c.l.b16 %v658
        %v735 = vunpack.c.l.b16 %v659
        %v736 = vunpack.c.l.b16 %v660
        %v737 = vunpack.c.l.b16 %v661
        %v738 = vunpack.c.l.b16 %v662
        %v739 = vunpack.c.l.b16 %v663
        %v740 = vunpack.c.l.b16 %v664
        %v741 = vunpack.c.l.b16 %v665
        %v742 = vunpack.c.l.b16 %v666
        %v743 = vunpack.c.l.b16 %v667
        %v744 = vunpack.c.l.b16 %v668
        %v745 = vunpack.c.l.b16 %v669
        %v746 = vunpack.c.l.b16 %v670
        %v747 = vunpack.c.l.b16 %v671
        %v748 = vunpack.c.l.b16 %v672
        %v749 = vunpack.c.l.b16 %v673
        %v750 = vpack.c.b16 %v735, %v734
        %v751 = vpack.c.b16 %v737, %v736
        %v752 = vpack.c.b16 %v739, %v738
        %v753 = vpack.c.b16 %v741, %v740
        %v754 = vpack.c.b16 %v743, %v742
        %v755 = vpack.c.b16 %v745, %v744
        %v756 = vpack.c.b16 %v747, %v746
        %v757 = vpack.c.b16 %v749, %v748
        %v782 = vunpack.c.l.b16 %v674
        %v783 = vunpack.c.l.b16 %v675
        %v784 = vunpack.c.l.b16 %v676
        %v785 = vunpack.c.l.b16 %v677
        %v786 = vunpack.c.l.b16 %v678
        %v787 = vunpack.c.l.b16 %v679
        %v788 = vunpack.c.l.b16 %v680
        %v789 = vunpack.c.l.b16 %v681
        %v790 = vunpack.c.l.b16 %v682
        %v791 = vunpack.c.l.b16 %v683
        %v792 = vunpack.c.l.b16 %v684
        %v793 = vunpack.c.l.b16 %v685
        %v794 = vunpack.c.l.b16 %v686
        %v795 = vunpack.c.l.b16 %v687
        %v796 = vunpack.c.l.b16 %v688
        %v797 = vunpack.c.l.b16 %v689
        %v798 = vpack.c.b16 %v783, %v782
        %v799 = vpack.c.b16 %v785, %v784
        %v800 = vpack.c.b16 %v787, %v786
        %v801 = vpack.c.b16 %v789, %v788
        %v802 = vpack.c.b16 %v791, %v790
        %v803 = vpack.c.b16 %v793, %v792
        %v804 = vpack.c.b16 %v795, %v794
        %v805 = vpack.c.b16 %v797, %v796
        %v830 = vunpack.c.l.b16 %v690
        %v831 = vunpack.c.l.b16 %v691
        %v832 = vunpack.c.l.b16 %v692
        %v833 = vunpack.c.l.b16 %v693
        %v834 = vunpack.c.l.b16 %v694
        %v835 = vunpack.c.l.b16 %v695
        %v836 = vunpack.c.l.b16 %v696
        %v837 = vunpack.c.l.b16 %v697
        %v838 = vunpack.c.l.b16 %v698
        %v839 = vunpack.c.l.b16 %v699
        %v840 = vunpack.c.l.b16 %v700
        %v841 = vunpack.c.l.b16 %v701
        %v842 = vunpack.c.l.b16 %v702
        %v843 = vunpack.c.l.b16 %v703
        %v844 = vunpack.c.l.b16 %v704
        %v845 = vunpack.c.l.b16 %v705
        %v846 = vpack.c.b16 %v831, %v830
        %v847 = vpack.c.b16 %v833, %v832
        %v848 = vpack.c.b16 %v835, %v834
        %v849 = vpack.c.b16 %v837, %v836
        %v850 = vpack.c.b16 %v839, %v838
        %v851 = vpack.c.b16 %v841, %v840
        %v852 = vpack.c.b16 %v843, %v842
        %v853 = vpack.c.b16 %v845, %v844
        %v864 = vunpack.c.l.b16 %v706
        %v865 = vunpack.c.l.b16 %v707
        %v866 = vpack.c.b16 %v865, %v864
        %v870 = vunpack.c.l.b16 %v708
        %v871 = vunpack.c.l.b16 %v709
        %v872 = vpack.c.b16 %v871, %v870
        %v876 = vunpack.c.l.b16 %v710
        %v877 = vunpack.c.l.b16 %v711
        %v878 = vpack.c.b16 %v877, %v876
        %v882 = vunpack.c.l.b16 %v712
        %v883 = vunpack.c.l.b16 %v713
        %v884 = vpack.c.b16 %v883, %v882
        %v888 = vunpack.c.l.b16 %v714
        %v889 = vunpack.c.l.b16 %v715
        %v890 = vpack.c.b16 %v889, %v888
        %v894 = vunpack.c.l.b16 %v716
        %v895 = vunpack.c.l.b16 %v717
        %v896 = vpack.c.b16 %v895, %v894
        %v898 = vld [vmem:[#allocation8] sm:$0xf]
        %v899 = vld [vmem:[#allocation8 + $0x4] sm:$0xf]
        %v900 = vld [vmem:[#allocation8 + $0x8] sm:$0xf]
        %v901 = vld [vmem:[#allocation8 + $0xc] sm:$0xf]
        %v902 = vld [vmem:[#allocation8 + $0x10] sm:$0xf]
        %v903 = vld [vmem:[#allocation8 + $0x14] sm:$0xf]
        %v904 = vld [vmem:[#allocation8 + $0x18] sm:$0xf]
        %v905 = vld [vmem:[#allocation8 + $0x1c] sm:$0xf]
        %v906 = vld [vmem:[#allocation8 + $0x20] sm:$0xf]
        %v907 = vld [vmem:[#allocation8 + $0x24] sm:$0xf]
        %v908 = vld [vmem:[#allocation8 + $0x28] sm:$0xf]
        %v909 = vld [vmem:[#allocation8 + $0x2c] sm:$0xf]
        %v910 = vld [vmem:[#allocation8 + $0x30] sm:$0xf]
        %v911 = vld [vmem:[#allocation8 + $0x34] sm:$0xf]
        %v912 = vld [vmem:[#allocation8 + $0x38] sm:$0xf]
        %v913 = vld [vmem:[#allocation8 + $0x3c] sm:$0xf]
        %v914 = vld [vmem:[#allocation8 + $0x40] sm:$0xf]
        %v915 = vld [vmem:[#allocation8 + $0x44] sm:$0xf]
        %v916 = vld [vmem:[#allocation8 + $0x48] sm:$0xf]
        %v917 = vld [vmem:[#allocation8 + $0x4c] sm:$0xf]
        %v918 = vld [vmem:[#allocation8 + $0x50] sm:$0xf]
        %v919 = vld [vmem:[#allocation8 + $0x54] sm:$0xf]
        %v920 = vld [vmem:[#allocation8 + $0x58] sm:$0xf]
        %v921 = vld [vmem:[#allocation8 + $0x5c] sm:$0xf]
        %v922 = vld [vmem:[#allocation8 + $0x60] sm:$0xf]
        %v923 = vld [vmem:[#allocation8 + $0x64] sm:$0xf]
        %v924 = vld [vmem:[#allocation8 + $0x68] sm:$0xf]
        %v925 = vld [vmem:[#allocation8 + $0x6c] sm:$0xf]
        %v926 = vld [vmem:[#allocation8 + $0x70] sm:$0xf]
        %v927 = vld [vmem:[#allocation8 + $0x74] sm:$0xf]
        %v928 = vld [vmem:[#allocation8 + $0x78] sm:$0xf]
        %v929 = vld [vmem:[#allocation8 + $0x7c] sm:$0xf]
        %v930 = vld [vmem:[#allocation8 + $0x80] sm:$0xf]
        %v931 = vld [vmem:[#allocation8 + $0x84] sm:$0xf]
        %v932 = vld [vmem:[#allocation8 + $0x88] sm:$0xf]
        %v933 = vld [vmem:[#allocation8 + $0x8c] sm:$0xf]
        %v934 = vld [vmem:[#allocation8 + $0x90] sm:$0xf]
        %v935 = vld [vmem:[#allocation8 + $0x94] sm:$0xf]
        %v936 = vld [vmem:[#allocation8 + $0x98] sm:$0xf]
        %v937 = vld [vmem:[#allocation8 + $0x9c] sm:$0xf]
        %v938 = vld [vmem:[#allocation8 + $0xa0] sm:$0xf]
        %v939 = vld [vmem:[#allocation8 + $0xa4] sm:$0xf]
        %v940 = vld [vmem:[#allocation8 + $0xa8] sm:$0xf]
        %v941 = vld [vmem:[#allocation8 + $0xac] sm:$0xf]
        %v942 = vld [vmem:[#allocation8 + $0xb0] sm:$0xf]
        %v943 = vld [vmem:[#allocation8 + $0xb4] sm:$0xf]
        %v944 = vld [vmem:[#allocation8 + $0xb8] sm:$0xf]
        %v945 = vld [vmem:[#allocation8 + $0xbc] sm:$0xf]
        %v946 = vld [vmem:[#allocation8 + $0xc0] sm:$0xf]
        %v947 = vld [vmem:[#allocation8 + $0xc4] sm:$0xf]
        %v948 = vld [vmem:[#allocation8 + $0xc8] sm:$0xf]
        %v949 = vld [vmem:[#allocation8 + $0xcc] sm:$0xf]
        %v950 = vld [vmem:[#allocation8 + $0xd0] sm:$0xf]
        %v951 = vld [vmem:[#allocation8 + $0xd4] sm:$0xf]
        %v952 = vld [vmem:[#allocation8 + $0xd8] sm:$0xf]
        %v953 = vld [vmem:[#allocation8 + $0xdc] sm:$0xf]
        %v954 = vld [vmem:[#allocation8 + $0xe0] sm:$0xf]
        %v955 = vld [vmem:[#allocation8 + $0xe4] sm:$0xf]
        %v956 = vld [vmem:[#allocation8 + $0xe8] sm:$0xf]
        %v957 = vld [vmem:[#allocation8 + $0xec] sm:$0xf]
        %v958 = vld [vmem:[#allocation8 + $0xf0] sm:$0xf]
        %v959 = vld [vmem:[#allocation8 + $0xf4] sm:$0xf]
        %v960 = vld [vmem:[#allocation8 + $0xf8] sm:$0xf]
        %v961 = vld [vmem:[#allocation8 + $0xfc] sm:$0xf]
        %v962 = vld [vmem:[#allocation8 + $0x100] sm:$0xf]
        %v963 = vld [vmem:[#allocation8 + $0x104] sm:$0xf]
        %v964 = vld [vmem:[#allocation8 + $0x108] sm:$0xf]
        %v965 = vld [vmem:[#allocation8 + $0x10c] sm:$0xf]
        %v966 = vld [vmem:[#allocation8 + $0x110] sm:$0xf]
        %v967 = vld [vmem:[#allocation8 + $0x114] sm:$0xf]
        %v968 = vld [vmem:[#allocation8 + $0x118] sm:$0xf]
        %v969 = vld [vmem:[#allocation8 + $0x11c] sm:$0xf]
        %v970 = vld [vmem:[#allocation8 + $0x120] sm:$0xf]
        %v971 = vld [vmem:[#allocation8 + $0x124] sm:$0xf]
        %v972 = vld [vmem:[#allocation8 + $0x128] sm:$0xf]
        %v973 = vld [vmem:[#allocation8 + $0x12c] sm:$0xf]
        %v974 = vld [vmem:[#allocation8 + $0x130] sm:$0xf]
        %v975 = vld [vmem:[#allocation8 + $0x134] sm:$0xf]
        %v976 = vld [vmem:[#allocation8 + $0x138] sm:$0xf]
        %v977 = vld [vmem:[#allocation8 + $0x13c] sm:$0xf]
        %v978 = vld [vmem:[#allocation8 + $0x140] sm:$0xf]
        %v979 = vld [vmem:[#allocation8 + $0x144] sm:$0xf]
        %v980 = vld [vmem:[#allocation8 + $0x148] sm:$0xf]
        %v981 = vld [vmem:[#allocation8 + $0x14c] sm:$0xf]
        %v982 = vld [vmem:[#allocation8 + $0x150] sm:$0xf]
        %v983 = vld [vmem:[#allocation8 + $0x154] sm:$0xf]
        %v984 = vld [vmem:[#allocation8 + $0x158] sm:$0xf]
        %v985 = vld [vmem:[#allocation8 + $0x15c] sm:$0xf]
        %v986 = vld [vmem:[#allocation8 + $0x160] sm:$0xf]
        %v987 = vld [vmem:[#allocation8 + $0x164] sm:$0xf]
        %v988 = vld [vmem:[#allocation8 + $0x168] sm:$0xf]
        %v989 = vld [vmem:[#allocation8 + $0x16c] sm:$0xf]
        %v990 = vld [vmem:[#allocation8 + $0x170] sm:$0xf]
        %v991 = vld [vmem:[#allocation8 + $0x174] sm:$0xf]
        %v992 = vld [vmem:[#allocation8 + $0x178] sm:$0xf]
        %v993 = vld [vmem:[#allocation8 + $0x17c] sm:$0xf]
        %v994 = vld [vmem:[#allocation8 + $0x180] sm:$0xf]
        %v995 = vld [vmem:[#allocation8 + $0x184] sm:$0xf]
        %v996 = vld [vmem:[#allocation8 + $0x188] sm:$0xf]
        %v997 = vld [vmem:[#allocation8 + $0x18c] sm:$0xf]
        %v998 = vld [vmem:[#allocation8 + $0x190] sm:$0xf]
        %v999 = vld [vmem:[#allocation8 + $0x194] sm:$0xf]
        %v1000 = vld [vmem:[#allocation8 + $0x198] sm:$0xf]
        %v1001 = vld [vmem:[#allocation8 + $0x19c] sm:$0xf]
        %v1002 = vld [vmem:[#allocation8 + $0x1a0] sm:$0xf]
        %v1003 = vld [vmem:[#allocation8 + $0x1a4] sm:$0xf]
        %v1004 = vld [vmem:[#allocation8 + $0x1a8] sm:$0xf]
        %v1005 = vld [vmem:[#allocation8 + $0x1ac] sm:$0xf]
        %v1006 = vld [vmem:[#allocation8 + $0x1b0] sm:$0xf]
        %v1007 = vld [vmem:[#allocation8 + $0x1b4] sm:$0xf]
        %v1008 = vld [vmem:[#allocation8 + $0x1b8] sm:$0xf]
        %v1009 = vld [vmem:[#allocation8 + $0x1bc] sm:$0xf]
        %v1010 = vld [vmem:[#allocation8 + $0x1c0] sm:$0xf]
        %v1011 = vld [vmem:[#allocation8 + $0x1c4] sm:$0xf]
        %v1012 = vld [vmem:[#allocation8 + $0x1c8] sm:$0xf]
        %v1013 = vld [vmem:[#allocation8 + $0x1cc] sm:$0xf]
        %v1014 = vld [vmem:[#allocation8 + $0x1d0] sm:$0xf]
        %v1015 = vld [vmem:[#allocation8 + $0x1d4] sm:$0xf]
        %v1016 = vld [vmem:[#allocation8 + $0x1d8] sm:$0xf]
        %v1017 = vld [vmem:[#allocation8 + $0x1dc] sm:$0xf]
        %v1018 = vld [vmem:[#allocation8 + $0x1e0] sm:$0xf]
        %v1019 = vld [vmem:[#allocation8 + $0x1e4] sm:$0xf]
        %v1020 = vld [vmem:[#allocation8 + $0x1e8] sm:$0xf]
        %v1021 = vld [vmem:[#allocation8 + $0x1ec] sm:$0xf]
        %v1022 = vld [vmem:[#allocation8 + $0x1f0] sm:$0xf]
        %v1023 = vld [vmem:[#allocation8 + $0x1f4] sm:$0xf]
        %v1024 = vld [vmem:[#allocation8 + $0x1f8] sm:$0xf]
        %v1025 = vld [vmem:[#allocation8 + $0x1fc] sm:$0xf]
        %v1026 = vld [vmem:[#allocation8 + $0x200] sm:$0xf]
        %v1027 = vld [vmem:[#allocation8 + $0x204] sm:$0xf]
        %v1028 = vld [vmem:[#allocation8 + $0x208] sm:$0xf]
        %v1029 = vld [vmem:[#allocation8 + $0x20c] sm:$0xf]
        %v1030 = vld [vmem:[#allocation8 + $0x210] sm:$0xf]
        %v1031 = vld [vmem:[#allocation8 + $0x214] sm:$0xf]
        %v1032 = vld [vmem:[#allocation8 + $0x218] sm:$0xf]
        %v1033 = vld [vmem:[#allocation8 + $0x21c] sm:$0xf]
        %v1034 = vld [vmem:[#allocation8 + $0x220] sm:$0xf]
        %v1035 = vld [vmem:[#allocation8 + $0x224] sm:$0xf]
        %v1036 = vld [vmem:[#allocation8 + $0x228] sm:$0xf]
        %v1037 = vld [vmem:[#allocation8 + $0x22c] sm:$0xf]
        %v1038 = vld [vmem:[#allocation8 + $0x230] sm:$0xf]
        %v1039 = vld [vmem:[#allocation8 + $0x234] sm:$0xf]
        %v1040 = vld [vmem:[#allocation8 + $0x238] sm:$0xf]
        %v1041 = vld [vmem:[#allocation8 + $0x23c] sm:$0xf]
        %v1186 = vunpack.c.l.b16 %v898
        %v1187 = vunpack.c.l.b16 %v899
        %v1188 = vunpack.c.l.b16 %v900
        %v1189 = vunpack.c.l.b16 %v901
        %v1190 = vunpack.c.l.b16 %v902
        %v1191 = vunpack.c.l.b16 %v903
        %v1192 = vunpack.c.l.b16 %v904
        %v1193 = vunpack.c.l.b16 %v905
        %v1194 = vunpack.c.l.b16 %v906
        %v1195 = vunpack.c.l.b16 %v907
        %v1196 = vunpack.c.l.b16 %v908
        %v1197 = vunpack.c.l.b16 %v909
        %v1198 = vunpack.c.l.b16 %v910
        %v1199 = vunpack.c.l.b16 %v911
        %v1200 = vunpack.c.l.b16 %v912
        %v1201 = vunpack.c.l.b16 %v913
        %v1202 = vunpack.c.l.b16 %v914
        %v1203 = vunpack.c.l.b16 %v915
        %v1204 = vunpack.c.l.b16 %v916
        %v1205 = vunpack.c.l.b16 %v917
        %v1206 = vunpack.c.l.b16 %v918
        %v1207 = vunpack.c.l.b16 %v919
        %v1208 = vunpack.c.l.b16 %v920
        %v1209 = vunpack.c.l.b16 %v921
        %v1210 = vunpack.c.l.b16 %v922
        %v1211 = vunpack.c.l.b16 %v923
        %v1212 = vunpack.c.l.b16 %v924
        %v1213 = vunpack.c.l.b16 %v925
        %v1214 = vunpack.c.l.b16 %v926
        %v1215 = vunpack.c.l.b16 %v927
        %v1216 = vunpack.c.l.b16 %v928
        %v1217 = vunpack.c.l.b16 %v929
        %v1218 = vunpack.c.l.b16 %v930
        %v1219 = vunpack.c.l.b16 %v931
        %v1220 = vunpack.c.l.b16 %v932
        %v1221 = vunpack.c.l.b16 %v933
        %v1222 = vunpack.c.l.b16 %v934
        %v1223 = vunpack.c.l.b16 %v935
        %v1224 = vunpack.c.l.b16 %v936
        %v1225 = vunpack.c.l.b16 %v937
        %v1226 = vunpack.c.l.b16 %v938
        %v1227 = vunpack.c.l.b16 %v939
        %v1228 = vunpack.c.l.b16 %v940
        %v1229 = vunpack.c.l.b16 %v941
        %v1230 = vunpack.c.l.b16 %v942
        %v1231 = vunpack.c.l.b16 %v943
        %v1232 = vunpack.c.l.b16 %v944
        %v1233 = vunpack.c.l.b16 %v945
        %v1234 = vunpack.c.l.b16 %v946
        %v1235 = vunpack.c.l.b16 %v947
        %v1236 = vunpack.c.l.b16 %v948
        %v1237 = vunpack.c.l.b16 %v949
        %v1238 = vunpack.c.l.b16 %v950
        %v1239 = vunpack.c.l.b16 %v951
        %v1240 = vunpack.c.l.b16 %v952
        %v1241 = vunpack.c.l.b16 %v953
        %v1242 = vunpack.c.l.b16 %v954
        %v1243 = vunpack.c.l.b16 %v955
        %v1244 = vunpack.c.l.b16 %v956
        %v1245 = vunpack.c.l.b16 %v957
        %v1246 = vunpack.c.l.b16 %v958
        %v1247 = vunpack.c.l.b16 %v959
        %v1248 = vunpack.c.l.b16 %v960
        %v1249 = vunpack.c.l.b16 %v961
        %v1250 = vunpack.c.l.b16 %v962
        %v1251 = vunpack.c.l.b16 %v963
        %v1252 = vunpack.c.l.b16 %v964
        %v1253 = vunpack.c.l.b16 %v965
        %v1254 = vunpack.c.l.b16 %v966
        %v1255 = vunpack.c.l.b16 %v967
        %v1256 = vunpack.c.l.b16 %v968
        %v1257 = vunpack.c.l.b16 %v969
        %v1258 = vunpack.c.l.b16 %v970
        %v1259 = vunpack.c.l.b16 %v971
        %v1260 = vunpack.c.l.b16 %v972
        %v1261 = vunpack.c.l.b16 %v973
        %v1262 = vunpack.c.l.b16 %v974
        %v1263 = vunpack.c.l.b16 %v975
        %v1264 = vunpack.c.l.b16 %v976
        %v1265 = vunpack.c.l.b16 %v977
        %v1266 = vunpack.c.l.b16 %v978
        %v1267 = vunpack.c.l.b16 %v979
        %v1268 = vunpack.c.l.b16 %v980
        %v1269 = vunpack.c.l.b16 %v981
        %v1270 = vunpack.c.l.b16 %v982
        %v1271 = vunpack.c.l.b16 %v983
        %v1272 = vunpack.c.l.b16 %v984
        %v1273 = vunpack.c.l.b16 %v985
        %v1274 = vunpack.c.l.b16 %v986
        %v1275 = vunpack.c.l.b16 %v987
        %v1276 = vunpack.c.l.b16 %v988
        %v1277 = vunpack.c.l.b16 %v989
        %v1278 = vunpack.c.l.b16 %v990
        %v1279 = vunpack.c.l.b16 %v991
        %v1280 = vunpack.c.l.b16 %v992
        %v1281 = vunpack.c.l.b16 %v993
        %v1282 = vunpack.c.l.b16 %v994
        %v1283 = vunpack.c.l.b16 %v995
        %v1284 = vunpack.c.l.b16 %v996
        %v1285 = vunpack.c.l.b16 %v997
        %v1286 = vunpack.c.l.b16 %v998
        %v1287 = vunpack.c.l.b16 %v999
        %v1288 = vunpack.c.l.b16 %v1000
        %v1289 = vunpack.c.l.b16 %v1001
        %v1290 = vunpack.c.l.b16 %v1002
        %v1291 = vunpack.c.l.b16 %v1003
        %v1292 = vunpack.c.l.b16 %v1004
        %v1293 = vunpack.c.l.b16 %v1005
        %v1294 = vunpack.c.l.b16 %v1006
        %v1295 = vunpack.c.l.b16 %v1007
        %v1296 = vunpack.c.l.b16 %v1008
        %v1297 = vunpack.c.l.b16 %v1009
        %v1298 = vunpack.c.l.b16 %v1010
        %v1299 = vunpack.c.l.b16 %v1011
        %v1300 = vunpack.c.l.b16 %v1012
        %v1301 = vunpack.c.l.b16 %v1013
        %v1302 = vunpack.c.l.b16 %v1014
        %v1303 = vunpack.c.l.b16 %v1015
        %v1304 = vunpack.c.l.b16 %v1016
        %v1305 = vunpack.c.l.b16 %v1017
        %v1306 = vunpack.c.l.b16 %v1018
        %v1307 = vunpack.c.l.b16 %v1019
        %v1308 = vunpack.c.l.b16 %v1020
        %v1309 = vunpack.c.l.b16 %v1021
        %v1310 = vunpack.c.l.b16 %v1022
        %v1311 = vunpack.c.l.b16 %v1023
        %v1312 = vunpack.c.l.b16 %v1024
        %v1313 = vunpack.c.l.b16 %v1025
        %v1314 = vunpack.c.l.b16 %v1026
        %v1315 = vunpack.c.l.b16 %v1027
        %v1316 = vunpack.c.l.b16 %v1028
        %v1317 = vunpack.c.l.b16 %v1029
        %v1318 = vunpack.c.l.b16 %v1030
        %v1319 = vunpack.c.l.b16 %v1031
        %v1320 = vunpack.c.l.b16 %v1032
        %v1321 = vunpack.c.l.b16 %v1033
        %v1322 = vunpack.c.l.b16 %v1034
        %v1323 = vunpack.c.l.b16 %v1035
        %v1324 = vunpack.c.l.b16 %v1036
        %v1325 = vunpack.c.l.b16 %v1037
        %v1326 = vunpack.c.l.b16 %v1038
        %v1327 = vunpack.c.l.b16 %v1039
        %v1328 = vunpack.c.l.b16 %v1040
        %v1329 = vunpack.c.l.b16 %v1041
        %v1330 = vpack.c.b16 %v1187, %v1186
        %v1331 = vpack.c.b16 %v1189, %v1188
        %v1332 = vpack.c.b16 %v1191, %v1190
        %v1333 = vpack.c.b16 %v1193, %v1192
        %v1334 = vpack.c.b16 %v1195, %v1194
        %v1335 = vpack.c.b16 %v1197, %v1196
        %v1336 = vpack.c.b16 %v1199, %v1198
        %v1337 = vpack.c.b16 %v1201, %v1200
        %v1338 = vpack.c.b16 %v1203, %v1202
        %v1339 = vpack.c.b16 %v1205, %v1204
        %v1340 = vpack.c.b16 %v1207, %v1206
        %v1341 = vpack.c.b16 %v1209, %v1208
        %v1342 = vpack.c.b16 %v1211, %v1210
        %v1343 = vpack.c.b16 %v1213, %v1212
        %v1344 = vpack.c.b16 %v1215, %v1214
        %v1345 = vpack.c.b16 %v1217, %v1216
        %v1346 = vpack.c.b16 %v1219, %v1218
        %v1347 = vpack.c.b16 %v1221, %v1220
        %v1348 = vpack.c.b16 %v1223, %v1222
        %v1349 = vpack.c.b16 %v1225, %v1224
        %v1350 = vpack.c.b16 %v1227, %v1226
        %v1351 = vpack.c.b16 %v1229, %v1228
        %v1352 = vpack.c.b16 %v1231, %v1230
        %v1353 = vpack.c.b16 %v1233, %v1232
        %v1354 = vpack.c.b16 %v1235, %v1234
        %v1355 = vpack.c.b16 %v1237, %v1236
        %v1356 = vpack.c.b16 %v1239, %v1238
        %v1357 = vpack.c.b16 %v1241, %v1240
        %v1358 = vpack.c.b16 %v1243, %v1242
        %v1359 = vpack.c.b16 %v1245, %v1244
        %v1360 = vpack.c.b16 %v1247, %v1246
        %v1361 = vpack.c.b16 %v1249, %v1248
        %v1362 = vpack.c.b16 %v1251, %v1250
        %v1363 = vpack.c.b16 %v1253, %v1252
        %v1364 = vpack.c.b16 %v1255, %v1254
        %v1365 = vpack.c.b16 %v1257, %v1256
        %v1366 = vpack.c.b16 %v1259, %v1258
        %v1367 = vpack.c.b16 %v1261, %v1260
        %v1368 = vpack.c.b16 %v1263, %v1262
        %v1369 = vpack.c.b16 %v1265, %v1264
        %v1370 = vpack.c.b16 %v1267, %v1266
        %v1371 = vpack.c.b16 %v1269, %v1268
        %v1372 = vpack.c.b16 %v1271, %v1270
        %v1373 = vpack.c.b16 %v1273, %v1272
        %v1374 = vpack.c.b16 %v1275, %v1274
        %v1375 = vpack.c.b16 %v1277, %v1276
        %v1376 = vpack.c.b16 %v1279, %v1278
        %v1377 = vpack.c.b16 %v1281, %v1280
        %v1378 = vpack.c.b16 %v1283, %v1282
        %v1379 = vpack.c.b16 %v1285, %v1284
        %v1380 = vpack.c.b16 %v1287, %v1286
        %v1381 = vpack.c.b16 %v1289, %v1288
        %v1382 = vpack.c.b16 %v1291, %v1290
        %v1383 = vpack.c.b16 %v1293, %v1292
        %v1384 = vpack.c.b16 %v1295, %v1294
        %v1385 = vpack.c.b16 %v1297, %v1296
        %v1386 = vpack.c.b16 %v1299, %v1298
        %v1387 = vpack.c.b16 %v1301, %v1300
        %v1388 = vpack.c.b16 %v1303, %v1302
        %v1389 = vpack.c.b16 %v1305, %v1304
        %v1390 = vpack.c.b16 %v1307, %v1306
        %v1391 = vpack.c.b16 %v1309, %v1308
        %v1392 = vpack.c.b16 %v1311, %v1310
        %v1393 = vpack.c.b16 %v1313, %v1312
        %v1394 = vpack.c.b16 %v1315, %v1314
        %v1395 = vpack.c.b16 %v1317, %v1316
        %v1396 = vpack.c.b16 %v1319, %v1318
        %v1397 = vpack.c.b16 %v1321, %v1320
        %v1398 = vpack.c.b16 %v1323, %v1322
        %v1399 = vpack.c.b16 %v1325, %v1324
        %v1400 = vpack.c.b16 %v1327, %v1326
        %v1401 = vpack.c.b16 %v1329, %v1328
        %1474 = vmatpush.bf16.msra.mxu0 %v1337
        %1475 = vmatpush.bf16.msra.mxu0 %v1336
        %1476 = vmatpush.bf16.msra.mxu0 %v1335
        %1477 = vmatpush.bf16.msra.mxu0 %v1334
        %1478 = vmatpush.bf16.msra.mxu0 %v1333
        %1479 = vmatpush.bf16.msra.mxu0 %v1332
        %1480 = vmatpush.bf16.msra.mxu0 %v1331
        %1481 = vmatpush.bf16.msra.mxu0 %v1330
        %1482 = vmatmul.bf16.gmra.mxu0 %v750
        %v1483 = vpop.f32.mrf.mxu0
        %v1484 = vadd.f32 0.0, %v1483
        %v1485 = vpop.f32.mrf.mxu0
        %v1486 = vadd.f32 0.0, %v1485
        %1487 = vmatmul.bf16.gmra.mxu0 %v751
        %v1488 = vpop.f32.mrf.mxu0
        %v1489 = vadd.f32 0.0, %v1488
        %v1490 = vpop.f32.mrf.mxu0
        %v1491 = vadd.f32 0.0, %v1490
        %1492 = vmatmul.bf16.gmra.mxu0 %v752
        %v1493 = vpop.f32.mrf.mxu0
        %v1494 = vadd.f32 0.0, %v1493
        %v1495 = vpop.f32.mrf.mxu0
        %v1496 = vadd.f32 0.0, %v1495
        %1497 = vmatmul.bf16.gmra.mxu0 %v753
        %v1498 = vpop.f32.mrf.mxu0
        %v1499 = vadd.f32 0.0, %v1498
        %v1500 = vpop.f32.mrf.mxu0
        %v1501 = vadd.f32 0.0, %v1500
        %1502 = vmatmul.bf16.gmra.mxu0 %v754
        %v1503 = vpop.f32.mrf.mxu0
        %v1504 = vadd.f32 0.0, %v1503
        %v1505 = vpop.f32.mrf.mxu0
        %v1506 = vadd.f32 0.0, %v1505
        %1507 = vmatmul.bf16.gmra.mxu0 %v755
        %v1508 = vpop.f32.mrf.mxu0
        %v1509 = vadd.f32 0.0, %v1508
        %v1510 = vpop.f32.mrf.mxu0
        %v1511 = vadd.f32 0.0, %v1510
        %1512 = vmatmul.bf16.gmra.mxu0 %v756
        %v1513 = vpop.f32.mrf.mxu0
        %v1514 = vadd.f32 0.0, %v1513
        %v1515 = vpop.f32.mrf.mxu0
        %v1516 = vadd.f32 0.0, %v1515
        %1517 = vmatmul.bf16.gmra.mxu0 %v757
        %v1518 = vpop.f32.mrf.mxu0
        %v1519 = vadd.f32 0.0, %v1518
        %v1520 = vpop.f32.mrf.mxu0
        %v1521 = vadd.f32 0.0, %v1520
        %1522 = vdwg.mxu0
        %1523 = vmatpush.bf16.msra.mxu0 %v1345
        %1524 = vmatpush.bf16.msra.mxu0 %v1344
        %1525 = vmatpush.bf16.msra.mxu0 %v1343
        %1526 = vmatpush.bf16.msra.mxu0 %v1342
        %1527 = vmatpush.bf16.msra.mxu0 %v1341
        %1528 = vmatpush.bf16.msra.mxu0 %v1340
        %1529 = vmatpush.bf16.msra.mxu0 %v1339
        %1530 = vmatpush.bf16.msra.mxu0 %v1338
        %1531 = vmatmul.bf16.gmra.mxu0 %v798
        %v1532 = vpop.f32.mrf.mxu0
        %v1533 = vadd.f32 %v1484, %v1532
        %v1534 = vpop.f32.mrf.mxu0
        %v1535 = vadd.f32 %v1486, %v1534
        %1536 = vmatmul.bf16.gmra.mxu0 %v799
        %v1537 = vpop.f32.mrf.mxu0
        %v1538 = vadd.f32 %v1489, %v1537
        %v1539 = vpop.f32.mrf.mxu0
        %v1540 = vadd.f32 %v1491, %v1539
        %1541 = vmatmul.bf16.gmra.mxu0 %v800
        %v1542 = vpop.f32.mrf.mxu0
        %v1543 = vadd.f32 %v1494, %v1542
        %v1544 = vpop.f32.mrf.mxu0
        %v1545 = vadd.f32 %v1496, %v1544
        %1546 = vmatmul.bf16.gmra.mxu0 %v801
        %v1547 = vpop.f32.mrf.mxu0
        %v1548 = vadd.f32 %v1499, %v1547
        %v1549 = vpop.f32.mrf.mxu0
        %v1550 = vadd.f32 %v1501, %v1549
        %1551 = vmatmul.bf16.gmra.mxu0 %v802
        %v1552 = vpop.f32.mrf.mxu0
        %v1553 = vadd.f32 %v1504, %v1552
        %v1554 = vpop.f32.mrf.mxu0
        %v1555 = vadd.f32 %v1506, %v1554
        %1556 = vmatmul.bf16.gmra.mxu0 %v803
        %v1557 = vpop.f32.mrf.mxu0
        %v1558 = vadd.f32 %v1509, %v1557
        %v1559 = vpop.f32.mrf.mxu0
        %v1560 = vadd.f32 %v1511, %v1559
        %1561 = vmatmul.bf16.gmra.mxu0 %v804
        %v1562 = vpop.f32.mrf.mxu0
        %v1563 = vadd.f32 %v1514, %v1562
        %v1564 = vpop.f32.mrf.mxu0
        %v1565 = vadd.f32 %v1516, %v1564
        %1566 = vmatmul.bf16.gmra.mxu0 %v805
        %v1567 = vpop.f32.mrf.mxu0
        %v1568 = vadd.f32 %v1519, %v1567
        %v1569 = vpop.f32.mrf.mxu0
        %v1570 = vadd.f32 %v1521, %v1569
        %1571 = vdwg.mxu0
        %1572 = vmatpush.bf16.msra.mxu0 %v1353
        %1573 = vmatpush.bf16.msra.mxu0 %v1352
        %1574 = vmatpush.bf16.msra.mxu0 %v1351
        %1575 = vmatpush.bf16.msra.mxu0 %v1350
        %1576 = vmatpush.bf16.msra.mxu0 %v1349
        %1577 = vmatpush.bf16.msra.mxu0 %v1348
        %1578 = vmatpush.bf16.msra.mxu0 %v1347
        %1579 = vmatpush.bf16.msra.mxu0 %v1346
        %1580 = vmatmul.bf16.gmra.mxu0 %v846
        %v1581 = vpop.f32.mrf.mxu0
        %v1582 = vadd.f32 %v1533, %v1581
        %v1583 = vpop.f32.mrf.mxu0
        %v1584 = vadd.f32 %v1535, %v1583
        %1585 = vmatmul.bf16.gmra.mxu0 %v847
        %v1586 = vpop.f32.mrf.mxu0
        %v1587 = vadd.f32 %v1538, %v1586
        %v1588 = vpop.f32.mrf.mxu0
        %v1589 = vadd.f32 %v1540, %v1588
        %1590 = vmatmul.bf16.gmra.mxu0 %v848
        %v1591 = vpop.f32.mrf.mxu0
        %v1592 = vadd.f32 %v1543, %v1591
        %v1593 = vpop.f32.mrf.mxu0
        %v1594 = vadd.f32 %v1545, %v1593
        %1595 = vmatmul.bf16.gmra.mxu0 %v849
        %v1596 = vpop.f32.mrf.mxu0
        %v1597 = vadd.f32 %v1548, %v1596
        %v1598 = vpop.f32.mrf.mxu0
        %v1599 = vadd.f32 %v1550, %v1598
        %1600 = vmatmul.bf16.gmra.mxu0 %v850
        %v1601 = vpop.f32.mrf.mxu0
        %v1602 = vadd.f32 %v1553, %v1601
        %v1603 = vpop.f32.mrf.mxu0
        %v1604 = vadd.f32 %v1555, %v1603
        %1605 = vmatmul.bf16.gmra.mxu0 %v851
        %v1606 = vpop.f32.mrf.mxu0
        %v1607 = vadd.f32 %v1558, %v1606
        %v1608 = vpop.f32.mrf.mxu0
        %v1609 = vadd.f32 %v1560, %v1608
        %1610 = vmatmul.bf16.gmra.mxu0 %v852
        %v1611 = vpop.f32.mrf.mxu0
        %v1612 = vadd.f32 %v1563, %v1611
        %v1613 = vpop.f32.mrf.mxu0
        %v1614 = vadd.f32 %v1565, %v1613
        %1615 = vmatmul.bf16.gmra.mxu0 %v853
        %v1616 = vpop.f32.mrf.mxu0
        %v1617 = vadd.f32 %v1568, %v1616
        %v1618 = vpop.f32.mrf.mxu0
        %v1619 = vadd.f32 %v1570, %v1618
        %1620 = vdwg.mxu0
        %1621 = vmatpush.bf16.msra.mxu0 %v1361
        %1622 = vmatpush.bf16.msra.mxu0 %v1360
        %1623 = vmatpush.bf16.msra.mxu0 %v1359
        %1624 = vmatpush.bf16.msra.mxu0 %v1358
        %1625 = vmatpush.bf16.msra.mxu0 %v1357
        %1626 = vmatpush.bf16.msra.mxu0 %v1356
        %1627 = vmatpush.bf16.msra.mxu0 %v1355
        %1628 = vmatpush.bf16.msra.mxu0 %v1354
        %1629 = vmatmul.bf16.gmra.mxu0 %v751
        %v1630 = vpop.f32.mrf.mxu0
        %v1631 = vadd.f32 %v1582, %v1630
        %v1632 = vpop.f32.mrf.mxu0
        %v1633 = vadd.f32 %v1584, %v1632
        %1634 = vmatmul.bf16.gmra.mxu0 %v752
        %v1635 = vpop.f32.mrf.mxu0
        %v1636 = vadd.f32 %v1587, %v1635
        %v1637 = vpop.f32.mrf.mxu0
        %v1638 = vadd.f32 %v1589, %v1637
        %1639 = vmatmul.bf16.gmra.mxu0 %v753
        %v1640 = vpop.f32.mrf.mxu0
        %v1641 = vadd.f32 %v1592, %v1640
        %v1642 = vpop.f32.mrf.mxu0
        %v1643 = vadd.f32 %v1594, %v1642
        %1644 = vmatmul.bf16.gmra.mxu0 %v754
        %v1645 = vpop.f32.mrf.mxu0
        %v1646 = vadd.f32 %v1597, %v1645
        %v1647 = vpop.f32.mrf.mxu0
        %v1648 = vadd.f32 %v1599, %v1647
        %1649 = vmatmul.bf16.gmra.mxu0 %v755
        %v1650 = vpop.f32.mrf.mxu0
        %v1651 = vadd.f32 %v1602, %v1650
        %v1652 = vpop.f32.mrf.mxu0
        %v1653 = vadd.f32 %v1604, %v1652
        %1654 = vmatmul.bf16.gmra.mxu0 %v756
        %v1655 = vpop.f32.mrf.mxu0
        %v1656 = vadd.f32 %v1607, %v1655
        %v1657 = vpop.f32.mrf.mxu0
        %v1658 = vadd.f32 %v1609, %v1657
        %1659 = vmatmul.bf16.gmra.mxu0 %v757
        %v1660 = vpop.f32.mrf.mxu0
        %v1661 = vadd.f32 %v1612, %v1660
        %v1662 = vpop.f32.mrf.mxu0
        %v1663 = vadd.f32 %v1614, %v1662
        %1664 = vmatmul.bf16.gmra.mxu0 %v866
        %v1665 = vpop.f32.mrf.mxu0
        %v1666 = vadd.f32 %v1617, %v1665
        %v1667 = vpop.f32.mrf.mxu0
        %v1668 = vadd.f32 %v1619, %v1667
        %1669 = vdwg.mxu0
        %1670 = vmatpush.bf16.msra.mxu0 %v1369
        %1671 = vmatpush.bf16.msra.mxu0 %v1368
        %1672 = vmatpush.bf16.msra.mxu0 %v1367
        %1673 = vmatpush.bf16.msra.mxu0 %v1366
        %1674 = vmatpush.bf16.msra.mxu0 %v1365
        %1675 = vmatpush.bf16.msra.mxu0 %v1364
        %1676 = vmatpush.bf16.msra.mxu0 %v1363
        %1677 = vmatpush.bf16.msra.mxu0 %v1362
        %1678 = vmatmul.bf16.gmra.mxu0 %v799
        %v1679 = vpop.f32.mrf.mxu0
        %v1680 = vadd.f32 %v1631, %v1679
        %v1681 = vpop.f32.mrf.mxu0
        %v1682 = vadd.f32 %v1633, %v1681
        %1683 = vmatmul.bf16.gmra.mxu0 %v800
        %v1684 = vpop.f32.mrf.mxu0
        %v1685 = vadd.f32 %v1636, %v1684
        %v1686 = vpop.f32.mrf.mxu0
        %v1687 = vadd.f32 %v1638, %v1686
        %1688 = vmatmul.bf16.gmra.mxu0 %v801
        %v1689 = vpop.f32.mrf.mxu0
        %v1690 = vadd.f32 %v1641, %v1689
        %v1691 = vpop.f32.mrf.mxu0
        %v1692 = vadd.f32 %v1643, %v1691
        %1693 = vmatmul.bf16.gmra.mxu0 %v802
        %v1694 = vpop.f32.mrf.mxu0
        %v1695 = vadd.f32 %v1646, %v1694
        %v1696 = vpop.f32.mrf.mxu0
        %v1697 = vadd.f32 %v1648, %v1696
        %1698 = vmatmul.bf16.gmra.mxu0 %v803
        %v1699 = vpop.f32.mrf.mxu0
        %v1700 = vadd.f32 %v1651, %v1699
        %v1701 = vpop.f32.mrf.mxu0
        %v1702 = vadd.f32 %v1653, %v1701
        %1703 = vmatmul.bf16.gmra.mxu0 %v804
        %v1704 = vpop.f32.mrf.mxu0
        %v1705 = vadd.f32 %v1656, %v1704
        %v1706 = vpop.f32.mrf.mxu0
        %v1707 = vadd.f32 %v1658, %v1706
        %1708 = vmatmul.bf16.gmra.mxu0 %v805
        %v1709 = vpop.f32.mrf.mxu0
        %v1710 = vadd.f32 %v1661, %v1709
        %v1711 = vpop.f32.mrf.mxu0
        %v1712 = vadd.f32 %v1663, %v1711
        %1713 = vmatmul.bf16.gmra.mxu0 %v872
        %v1714 = vpop.f32.mrf.mxu0
        %v1715 = vadd.f32 %v1666, %v1714
        %v1716 = vpop.f32.mrf.mxu0
        %v1717 = vadd.f32 %v1668, %v1716
        %1718 = vdwg.mxu0
        %1719 = vmatpush.bf16.msra.mxu0 %v1377
        %1720 = vmatpush.bf16.msra.mxu0 %v1376
        %1721 = vmatpush.bf16.msra.mxu0 %v1375
        %1722 = vmatpush.bf16.msra.mxu0 %v1374
        %1723 = vmatpush.bf16.msra.mxu0 %v1373
        %1724 = vmatpush.bf16.msra.mxu0 %v1372
        %1725 = vmatpush.bf16.msra.mxu0 %v1371
        %1726 = vmatpush.bf16.msra.mxu0 %v1370
        %1727 = vmatmul.bf16.gmra.mxu0 %v847
        %v1728 = vpop.f32.mrf.mxu0
        %v1729 = vadd.f32 %v1680, %v1728
        %v1730 = vpop.f32.mrf.mxu0
        %v1731 = vadd.f32 %v1682, %v1730
        %1732 = vmatmul.bf16.gmra.mxu0 %v848
        %v1733 = vpop.f32.mrf.mxu0
        %v1734 = vadd.f32 %v1685, %v1733
        %v1735 = vpop.f32.mrf.mxu0
        %v1736 = vadd.f32 %v1687, %v1735
        %1737 = vmatmul.bf16.gmra.mxu0 %v849
        %v1738 = vpop.f32.mrf.mxu0
        %v1739 = vadd.f32 %v1690, %v1738
        %v1740 = vpop.f32.mrf.mxu0
        %v1741 = vadd.f32 %v1692, %v1740
        %1742 = vmatmul.bf16.gmra.mxu0 %v850
        %v1743 = vpop.f32.mrf.mxu0
        %v1744 = vadd.f32 %v1695, %v1743
        %v1745 = vpop.f32.mrf.mxu0
        %v1746 = vadd.f32 %v1697, %v1745
        %1747 = vmatmul.bf16.gmra.mxu0 %v851
        %v1748 = vpop.f32.mrf.mxu0
        %v1749 = vadd.f32 %v1700, %v1748
        %v1750 = vpop.f32.mrf.mxu0
        %v1751 = vadd.f32 %v1702, %v1750
        %1752 = vmatmul.bf16.gmra.mxu0 %v852
        %v1753 = vpop.f32.mrf.mxu0
        %v1754 = vadd.f32 %v1705, %v1753
        %v1755 = vpop.f32.mrf.mxu0
        %v1756 = vadd.f32 %v1707, %v1755
        %1757 = vmatmul.bf16.gmra.mxu0 %v853
        %v1758 = vpop.f32.mrf.mxu0
        %v1759 = vadd.f32 %v1710, %v1758
        %v1760 = vpop.f32.mrf.mxu0
        %v1761 = vadd.f32 %v1712, %v1760
        %1762 = vmatmul.bf16.gmra.mxu0 %v878
        %v1763 = vpop.f32.mrf.mxu0
        %v1764 = vadd.f32 %v1715, %v1763
        %v1765 = vpop.f32.mrf.mxu0
        %v1766 = vadd.f32 %v1717, %v1765
        %1767 = vdwg.mxu0
        %1768 = vmatpush.bf16.msra.mxu0 %v1385
        %1769 = vmatpush.bf16.msra.mxu0 %v1384
        %1770 = vmatpush.bf16.msra.mxu0 %v1383
        %1771 = vmatpush.bf16.msra.mxu0 %v1382
        %1772 = vmatpush.bf16.msra.mxu0 %v1381
        %1773 = vmatpush.bf16.msra.mxu0 %v1380
        %1774 = vmatpush.bf16.msra.mxu0 %v1379
        %1775 = vmatpush.bf16.msra.mxu0 %v1378
        %1776 = vmatmul.bf16.gmra.mxu0 %v752
        %v1777 = vpop.f32.mrf.mxu0
        %v1778 = vadd.f32 %v1729, %v1777
        %v1779 = vpop.f32.mrf.mxu0
        %v1780 = vadd.f32 %v1731, %v1779
        %1781 = vmatmul.bf16.gmra.mxu0 %v753
        %v1782 = vpop.f32.mrf.mxu0
        %v1783 = vadd.f32 %v1734, %v1782
        %v1784 = vpop.f32.mrf.mxu0
        %v1785 = vadd.f32 %v1736, %v1784
        %1786 = vmatmul.bf16.gmra.mxu0 %v754
        %v1787 = vpop.f32.mrf.mxu0
        %v1788 = vadd.f32 %v1739, %v1787
        %v1789 = vpop.f32.mrf.mxu0
        %v1790 = vadd.f32 %v1741, %v1789
        %1791 = vmatmul.bf16.gmra.mxu0 %v755
        %v1792 = vpop.f32.mrf.mxu0
        %v1793 = vadd.f32 %v1744, %v1792
        %v1794 = vpop.f32.mrf.mxu0
        %v1795 = vadd.f32 %v1746, %v1794
        %1796 = vmatmul.bf16.gmra.mxu0 %v756
        %v1797 = vpop.f32.mrf.mxu0
        %v1798 = vadd.f32 %v1749, %v1797
        %v1799 = vpop.f32.mrf.mxu0
        %v1800 = vadd.f32 %v1751, %v1799
        %1801 = vmatmul.bf16.gmra.mxu0 %v757
        %v1802 = vpop.f32.mrf.mxu0
        %v1803 = vadd.f32 %v1754, %v1802
        %v1804 = vpop.f32.mrf.mxu0
        %v1805 = vadd.f32 %v1756, %v1804
        %1806 = vmatmul.bf16.gmra.mxu0 %v866
        %v1807 = vpop.f32.mrf.mxu0
        %v1808 = vadd.f32 %v1759, %v1807
        %v1809 = vpop.f32.mrf.mxu0
        %v1810 = vadd.f32 %v1761, %v1809
        %1811 = vmatmul.bf16.gmra.mxu0 %v884
        %v1812 = vpop.f32.mrf.mxu0
        %v1813 = vadd.f32 %v1764, %v1812
        %v1814 = vpop.f32.mrf.mxu0
        %v1815 = vadd.f32 %v1766, %v1814
        %1816 = vdwg.mxu0
        %1817 = vmatpush.bf16.msra.mxu0 %v1393
        %1818 = vmatpush.bf16.msra.mxu0 %v1392
        %1819 = vmatpush.bf16.msra.mxu0 %v1391
        %1820 = vmatpush.bf16.msra.mxu0 %v1390
        %1821 = vmatpush.bf16.msra.mxu0 %v1389
        %1822 = vmatpush.bf16.msra.mxu0 %v1388
        %1823 = vmatpush.bf16.msra.mxu0 %v1387
        %1824 = vmatpush.bf16.msra.mxu0 %v1386
        %1825 = vmatmul.bf16.gmra.mxu0 %v800
        %v1826 = vpop.f32.mrf.mxu0
        %v1827 = vadd.f32 %v1778, %v1826
        %v1828 = vpop.f32.mrf.mxu0
        %v1829 = vadd.f32 %v1780, %v1828
        %1830 = vmatmul.bf16.gmra.mxu0 %v801
        %v1831 = vpop.f32.mrf.mxu0
        %v1832 = vadd.f32 %v1783, %v1831
        %v1833 = vpop.f32.mrf.mxu0
        %v1834 = vadd.f32 %v1785, %v1833
        %1835 = vmatmul.bf16.gmra.mxu0 %v802
        %v1836 = vpop.f32.mrf.mxu0
        %v1837 = vadd.f32 %v1788, %v1836
        %v1838 = vpop.f32.mrf.mxu0
        %v1839 = vadd.f32 %v1790, %v1838
        %1840 = vmatmul.bf16.gmra.mxu0 %v803
        %v1841 = vpop.f32.mrf.mxu0
        %v1842 = vadd.f32 %v1793, %v1841
        %v1843 = vpop.f32.mrf.mxu0
        %v1844 = vadd.f32 %v1795, %v1843
        %1845 = vmatmul.bf16.gmra.mxu0 %v804
        %v1846 = vpop.f32.mrf.mxu0
        %v1847 = vadd.f32 %v1798, %v1846
        %v1848 = vpop.f32.mrf.mxu0
        %v1849 = vadd.f32 %v1800, %v1848
        %1850 = vmatmul.bf16.gmra.mxu0 %v805
        %v1851 = vpop.f32.mrf.mxu0
        %v1852 = vadd.f32 %v1803, %v1851
        %v1853 = vpop.f32.mrf.mxu0
        %v1854 = vadd.f32 %v1805, %v1853
        %1855 = vmatmul.bf16.gmra.mxu0 %v872
        %v1856 = vpop.f32.mrf.mxu0
        %v1857 = vadd.f32 %v1808, %v1856
        %v1858 = vpop.f32.mrf.mxu0
        %v1859 = vadd.f32 %v1810, %v1858
        %1860 = vmatmul.bf16.gmra.mxu0 %v890
        %v1861 = vpop.f32.mrf.mxu0
        %v1862 = vadd.f32 %v1813, %v1861
        %v1863 = vpop.f32.mrf.mxu0
        %v1864 = vadd.f32 %v1815, %v1863
        %1865 = vdwg.mxu0
        %1866 = vmatpush.bf16.msra.mxu0 %v1401
        %1867 = vmatpush.bf16.msra.mxu0 %v1400
        %1868 = vmatpush.bf16.msra.mxu0 %v1399
        %1869 = vmatpush.bf16.msra.mxu0 %v1398
        %1870 = vmatpush.bf16.msra.mxu0 %v1397
        %1871 = vmatpush.bf16.msra.mxu0 %v1396
        %1872 = vmatpush.bf16.msra.mxu0 %v1395
        %1873 = vmatpush.bf16.msra.mxu0 %v1394
        %1874 = vmatmul.bf16.gmra.mxu0 %v848
        %v1875 = vpop.f32.mrf.mxu0
        %v1876 = vadd.f32 %v1827, %v1875
        %v1877 = vpop.f32.mrf.mxu0
        %v1878 = vadd.f32 %v1829, %v1877
        %1879 = vmatmul.bf16.gmra.mxu0 %v849
        %v1880 = vpop.f32.mrf.mxu0
        %v1881 = vadd.f32 %v1832, %v1880
        %v1882 = vpop.f32.mrf.mxu0
        %v1883 = vadd.f32 %v1834, %v1882
        %1884 = vmatmul.bf16.gmra.mxu0 %v850
        %v1885 = vpop.f32.mrf.mxu0
        %v1886 = vadd.f32 %v1837, %v1885
        %v1887 = vpop.f32.mrf.mxu0
        %v1888 = vadd.f32 %v1839, %v1887
        %1889 = vmatmul.bf16.gmra.mxu0 %v851
        %v1890 = vpop.f32.mrf.mxu0
        %v1891 = vadd.f32 %v1842, %v1890
        %v1892 = vpop.f32.mrf.mxu0
        %v1893 = vadd.f32 %v1844, %v1892
        %1894 = vmatmul.bf16.gmra.mxu0 %v852
        %v1895 = vpop.f32.mrf.mxu0
        %v1896 = vadd.f32 %v1847, %v1895
        %v1897 = vpop.f32.mrf.mxu0
        %v1898 = vadd.f32 %v1849, %v1897
        %1899 = vmatmul.bf16.gmra.mxu0 %v853
        %v1900 = vpop.f32.mrf.mxu0
        %v1901 = vadd.f32 %v1852, %v1900
        %v1902 = vpop.f32.mrf.mxu0
        %v1903 = vadd.f32 %v1854, %v1902
        %1904 = vmatmul.bf16.gmra.mxu0 %v878
        %v1905 = vpop.f32.mrf.mxu0
        %v1906 = vadd.f32 %v1857, %v1905
        %v1907 = vpop.f32.mrf.mxu0
        %v1908 = vadd.f32 %v1859, %v1907
        %1909 = vmatmul.bf16.gmra.mxu0 %v896
        %v1910 = vpop.f32.mrf.mxu0
        %v1911 = vadd.f32 %v1862, %v1910
        %v1912 = vpop.f32.mrf.mxu0
        %v1913 = vadd.f32 %v1864, %v1912
        %1914 = vdwg.mxu0
        %v1915 = vld [vmem:[%s470] sm:$0x1]
        %v1917 = vperm.slane %v1915, 0
        %v1919 = vmul.f32 %v1876, %v1917
        %v1920 = vmul.f32 %v1878, %v1917
        %v1921 = vmul.f32 %v1881, %v1917
        %v1922 = vmul.f32 %v1883, %v1917
        %v1923 = vmul.f32 %v1886, %v1917
        %v1924 = vmul.f32 %v1888, %v1917
        %v1925 = vmul.f32 %v1891, %v1917
        %v1926 = vmul.f32 %v1893, %v1917
        %v1927 = vmul.f32 %v1896, %v1917
        %v1928 = vmul.f32 %v1898, %v1917
        %v1929 = vmul.f32 %v1901, %v1917
        %v1930 = vmul.f32 %v1903, %v1917
        %v1931 = vmul.f32 %v1906, %v1917
        %v1932 = vmul.f32 %v1908, %v1917
        %v1933 = vmul.f32 %v1911, %v1917
        %v1934 = vmul.f32 %v1913, %v1917
        %v1935 = vld [vmem:[%s473] sm:$0x1]
        %v1937 = vperm.slane %v1935, 0
        %v1939 = vadd.f32 %v1919, %v1937
        %v1940 = vadd.f32 %v1920, %v1937
        %v1941 = vadd.f32 %v1921, %v1937
        %v1942 = vadd.f32 %v1922, %v1937
        %v1943 = vadd.f32 %v1923, %v1937
        %v1944 = vadd.f32 %v1924, %v1937
        %v1945 = vadd.f32 %v1925, %v1937
        %v1946 = vadd.f32 %v1926, %v1937
        %v1947 = vadd.f32 %v1927, %v1937
        %v1948 = vadd.f32 %v1928, %v1937
        %v1949 = vadd.f32 %v1929, %v1937
        %v1950 = vadd.f32 %v1930, %v1937
        %v1951 = vadd.f32 %v1931, %v1937
        %v1952 = vadd.f32 %v1932, %v1937
        %v1953 = vadd.f32 %v1933, %v1937
        %v1954 = vadd.f32 %v1934, %v1937
        %v1955 = vmax.f32 %v1939, 0.0
        %v1956 = vmax.f32 %v1940, 0.0
        %v1957 = vmax.f32 %v1941, 0.0
        %v1958 = vmax.f32 %v1942, 0.0
        %v1959 = vmax.f32 %v1943, 0.0
        %v1960 = vmax.f32 %v1944, 0.0
        %v1961 = vmax.f32 %v1945, 0.0
        %v1962 = vmax.f32 %v1946, 0.0
        %v1963 = vmax.f32 %v1947, 0.0
        %v1964 = vmax.f32 %v1948, 0.0
        %v1965 = vmax.f32 %v1949, 0.0
        %v1966 = vmax.f32 %v1950, 0.0
        %v1967 = vmax.f32 %v1951, 0.0
        %v1968 = vmax.f32 %v1952, 0.0
        %v1969 = vmax.f32 %v1953, 0.0
        %v1970 = vmax.f32 %v1954, 0.0
        %v1971 = vpack.c.bf16 %v1955, %v1955
        %v1972 = vpack.c.bf16 %v1956, %v1956
        %v1973 = vpack.c.bf16 %v1957, %v1957
        %v1974 = vpack.c.bf16 %v1958, %v1958
        %v1975 = vpack.c.bf16 %v1959, %v1959
        %v1976 = vpack.c.bf16 %v1960, %v1960
        %v1977 = vpack.c.bf16 %v1961, %v1961
        %v1978 = vpack.c.bf16 %v1962, %v1962
        %v1979 = vpack.c.bf16 %v1963, %v1963
        %v1980 = vpack.c.bf16 %v1964, %v1964
        %v1981 = vpack.c.bf16 %v1965, %v1965
        %v1982 = vpack.c.bf16 %v1966, %v1966
        %v1983 = vpack.c.bf16 %v1967, %v1967
        %v1984 = vpack.c.bf16 %v1968, %v1968
        %v1985 = vpack.c.bf16 %v1969, %v1969
        %v1986 = vpack.c.bf16 %v1970, %v1970
        %1987 = vst [vmem:[%s458] sm:$0xf] %v1971
        %1988 = vst [vmem:[%s458 + $0x4] sm:$0xf] %v1972
        %1989 = vst [vmem:[%s458 + $0x8] sm:$0xf] %v1973
        %1990 = vst [vmem:[%s458 + $0xc] sm:$0xf] %v1974
        %1991 = vst [vmem:[%s458 + $0x10] sm:$0xf] %v1975
        %1992 = vst [vmem:[%s458 + $0x14] sm:$0xf] %v1976
        %1993 = vst [vmem:[%s458 + $0x18] sm:$0xf] %v1977
        %1994 = vst [vmem:[%s458 + $0x1c] sm:$0xf] %v1978
        %1995 = vst [vmem:[%s458 + $0x20] sm:$0xf] %v1979
        %1996 = vst [vmem:[%s458 + $0x24] sm:$0xf] %v1980
        %1997 = vst [vmem:[%s458 + $0x28] sm:$0xf] %v1981
        %1998 = vst [vmem:[%s458 + $0x2c] sm:$0xf] %v1982
        %1999 = vst [vmem:[%s458 + $0x30] sm:$0xf] %v1983
        %2000 = vst [vmem:[%s458 + $0x34] sm:$0xf] %v1984
        %2001 = vst [vmem:[%s458 + $0x38] sm:$0xf] %v1985
        %2002 = vst [vmem:[%s458 + $0x3c] sm:$0xf] %v1986
        %s2003 = sand.u32 %s236, 1
        %s2004 = scalar_lea.sflag [#allocation4], %s2003
        %s2005 = sand.u32 %s236, 1
        %s2006 = smul.addr %s2005, 64
        %s2007 = scalar_lea.vmem [#allocation10], %s2006
        // Predicated region
        $region61: #{tpu_custom_call.1} parent=43 // pred_check
          %p2008 = pneg %p246
        $region62: #{tpu_custom_call.1} parent=43 // pred_check_branch
          %2010 = sbr.rel (%p2008) target = $region64
        $region63: #{tpu_custom_call.1} parent=43 // pred_region
          %s2011 = smul.u32 16, %s33
          %2013 = vsyncadd %s2004, 0
          %s2014 = sadd.s32 %s34, %s2011
          %s2015 = smul.addr %s32, 32
          %s2016 = sadd.s32 %s2014, %s2015
          %s2017 = smul.addr %s2016, 4
          %s2018 = scalar_lea.hbm %s6, %s2017
          %s2019 = sshll.u32 %s2007, 4
          %s2020 = int_to_ptr.vmem [resolvable:$true] %s2019
          %s2021 = sshll.u32 %s2018, 4
          %s2022 = int_to_ptr.hbm [resolvable:$true] %s2021
          %2027 = dma.vmem_to_hbm [thread:$0]  %s2020, 1024, %s2022, %s2004, 64, 64, 4
        $region64: #{tpu_custom_call.1} parent=43 // pred_fallthru
          _
      $region44: #{tpu_custom_call.1} parent=5 // pred_fallthru
        _
      %p2028 = scmp.le.s32.totalorder 2, %s22
      // Predicated region
      $region65: #{tpu_custom_call.1} parent=5 // pred_check
        %p2029 = pneg %p2028
      $region66: #{tpu_custom_call.1} parent=5 // pred_check_branch
        %2031 = sbr.rel (%p2029) target = $region68
      $region67: #{tpu_custom_call.1} parent=5 // pred_region
        %s2032 = ssub.s32 %s22, 2
        // Predicated region
        $region69: #{tpu_custom_call.1} parent=67 // pred_check
          %p2033 = pneg %p252
        $region70: #{tpu_custom_call.1} parent=67 // pred_check_branch
          %2035 = sbr.rel (%p2033) target = $region72
        $region71: #{tpu_custom_call.1} parent=67 // pred_region
          %s2036 = sand.u32 %s237, 1
          %s2037 = scalar_lea.sflag [#allocation4], %s2036
          %s2038 = sand.u32 %s237, 1
          %s2039 = smul.addr %s2038, 64
          %s2040 = scalar_lea.vmem [#allocation10], %s2039
          %2042 = dma.done %s2037, 1024
        $region72: #{tpu_custom_call.1} parent=67 // pred_fallthru
          _
      $region68: #{tpu_custom_call.1} parent=5 // pred_fallthru
        _
    $region6: #{tpu_custom_call.1} parent=1 // loop_footer
      %s26 = sadd.s32 1, %s22
    $region7: #{tpu_custom_call.1} parent=1 // loop_footer_branch
      %21 = sbr.rel target = $region3
    $region8: #{tpu_custom_call.1} parent=1 // loop_exit
      _
    %2043 = vsyncpa [#allocation3], 1
    %s2044 = scalar_lea.sflag [#allocation3], 1
    %2045 = vsyncpa %s2044, 1
    %2046 = vsyncpa [#allocation6], 1
    %s2047 = scalar_lea.sflag [#allocation6], 1
    %2048 = vsyncpa %s2047, 1
    %2049 = vsyncpa [#allocation9], 1
    %2050 = vsyncpa [#allocation4], 1
    %s2051 = scalar_lea.sflag [#allocation4], 1
    %2052 = vsyncpa %s2051, 1

</llo_original>
